<compile_context>
chip_gen: v6e
topology: v6e:2x2x1
jax: 0.10.0
libtpu: 0.0.40
codegen_flags: <defaults>
</compile_context>

<pallas_src>
import functools

import jax
import jax.numpy as jnp
from jax import lax
from jax.experimental import pallas as pl
from jax.experimental.pallas import tpu as pltpu

BN_EPS = 1e-5


def _round_up(x, m):
    return (x + m - 1) // m * m


def _cdiv(a, b):
    return (a + b - 1) // b


def _pick_vmem_limit():
    """Generation-aware scoped-VMEM limit (bytes)."""
    try:
        cap = int(pltpu.get_tpu_info().vmem_capacity_bytes)
    except Exception:
        return 40 * 1024 * 1024                      # safe on every generation
    if cap >= 128 * 1024 * 1024:                     # v5e / v6e (128 MiB physical)
        return 96 * 1024 * 1024
    return min(44 * 1024 * 1024, (cap * 3) // 4)     # v7x (64 MiB physical)


_VMEM_LIMIT = _pick_vmem_limit()


# --------------------------------------------------------------------------- #
# Phase 1: batch statistics of h2 = ReLU(fc2(ReLU(fc1(x))))                    #
#   grid = (2 cores, tiles_per_core); each core accumulates its own (8,64)     #
#   sum / sum-of-squares block, reduced in the wrapper.                        #
# --------------------------------------------------------------------------- #
def _stats_kernel(x_ref, w1_ref, b1_ref, w2_ref, b2_ref,
                  sum_ref, sumsq_ref, *, true_batch, tile_b, tiles_per_core,
                  compute_dtype):
    c = pl.program_id(0)
    i = pl.program_id(1)

    @pl.when(i == 0)
    def _():
        sum_ref[...] = jnp.zeros_like(sum_ref)
        sumsq_ref[...] = jnp.zeros_like(sumsq_ref)

    x = x_ref[...].astype(compute_dtype)
    h = jnp.dot(x, w1_ref[...], preferred_element_type=jnp.float32) + b1_ref[...]
    h = jnp.maximum(h.astype(compute_dtype), 0)
    h = jnp.dot(h, w2_ref[...], preferred_element_type=jnp.float32) + b2_ref[...]
    h = jnp.maximum(h, 0.0)  # keep pre-BN activation in f32 for the statistics

    # Mask batch-padding rows so they don't pollute the BN statistics.
    tile_idx = c * tiles_per_core + i
    row = tile_idx * tile_b + lax.broadcasted_iota(jnp.int32, (tile_b, 1), 0)
    h = jnp.where(row < true_batch, h, 0.0)
    # (1,64) partial sums broadcast over the 8 sublanes of this core's block.
    sum_ref[...] += jnp.sum(h, axis=0, keepdims=True)
    sumsq_ref[...] += jnp.sum(h * h, axis=0, keepdims=True)


# --------------------------------------------------------------------------- #
# Phase 2: full forward with BatchNorm folded into fc3's weight/bias           #
# --------------------------------------------------------------------------- #
def _mlp_kernel(x_ref,
                w1_ref, b1_ref, w2_ref, b2_ref,
                w3_ref, b3_ref, w4_ref, b4_ref,
                w5_ref, b5_ref, w6_ref, b6_ref,
                o_ref, *, compute_dtype):
    x = x_ref[...].astype(compute_dtype)
    h = jnp.dot(x, w1_ref[...], preferred_element_type=jnp.float32) + b1_ref[...]
    h = jnp.maximum(h.astype(compute_dtype), 0)
    h = jnp.dot(h, w2_ref[...], preferred_element_type=jnp.float32) + b2_ref[...]
    h = jnp.maximum(h.astype(compute_dtype), 0)
    # BatchNorm1d (training-mode batch stats) is folded into w3/b3 by the wrapper.
    h = jnp.dot(h, w3_ref[...], preferred_element_type=jnp.float32) + b3_ref[...]
    h = jnp.maximum(h.astype(compute_dtype), 0)
    h = jnp.dot(h, w4_ref[...], preferred_element_type=jnp.float32) + b4_ref[...]
    h = jnp.maximum(h.astype(compute_dtype), 0)     # zero-padded lanes stay 0
    h = jnp.dot(h, w5_ref[...], preferred_element_type=jnp.float32) + b5_ref[...]
    h = jnp.maximum(h.astype(compute_dtype), 0)
    h = jnp.dot(h, w6_ref[...], preferred_element_type=jnp.float32) + b6_ref[...]
    o_ref[...] = jax.nn.sigmoid(h).astype(o_ref.dtype)


# --------------------------------------------------------------------------- #
# Wrapper                                                                      #
# --------------------------------------------------------------------------- #
@functools.partial(jax.jit, static_argnames=("tile_b", "compute_dtype"))
def mymodel_forward(x, params, *, tile_b=2048, compute_dtype=jnp.bfloat16):
    """Fused forward pass. x: (B, input_dim) float32. Returns (B, 6) float32."""
    w1, b1, w2, b2, gamma, beta, w3, b3, w4, b4, w5, b5, w6, b6 = params
    batch, input_dim = x.shape

    # ---- batch tiling: sublane-aligned tiles; force an even tile count (>= 2)
    #      so both the phase-1 core split and the phase-2 "parallel" axis cover
    #      both TensorCores on v7x (harmless on single-core chips).
    tile = max(8, min(_round_up(tile_b, 8), _round_up(_cdiv(batch, 2), 8)))
    num_tiles = _round_up(_cdiv(batch, tile), 2)
    batch_pad = num_tiles * tile
    if batch_pad != batch:
        x = jnp.pad(x, ((0, batch_pad - batch), (0, 0)))
    tiles_per_core = num_tiles // 2

    # ---- pack weights: lane-align the 196-wide hidden layer (196 -> 256) with
    #      zeros (identical math); cast matmul operands to compute_dtype, keep
    #      biases in f32.
    h4 = w4.shape[1]
    h4_pad = _round_up(h4, 128)
    w4p = jnp.pad(w4, ((0, 0), (0, h4_pad - h4)))
    b4p = jnp.pad(b4, ((0, 0), (0, h4_pad - h4)))
    w5p = jnp.pad(w5, ((0, h4_pad - h4), (0, 0)))

    w1c, w2c = (w.astype(compute_dtype) for w in (w1, w2))
    w4c, w5c, w6c = (w.astype(compute_dtype) for w in (w4p, w5p, w6))
    b1f, b2f = (b.astype(jnp.float32) for b in (b1, b2))
    b4f, b5f, b6f = (b.astype(jnp.float32) for b in (b4p, b5, b6))

    # ---- phase 1: cross-tile BN statistics, split across 2 cores.
    stats_kernel = functools.partial(
        _stats_kernel, true_batch=batch, tile_b=tile,
        tiles_per_core=tiles_per_core, compute_dtype=compute_dtype)
    cspec2 = lambda shape: pl.BlockSpec(shape, lambda c, i: (0, 0))
    acc_spec = pl.BlockSpec((8, 64), lambda c, i: (c, 0))
    w1bytes = sum(int(a.size) * a.dtype.itemsize for a in (w1c, b1f, w2c, b2f))
    flops1 = 2 * batch_pad * (input_dim * 64 + 64 * 64)
    sum_out, sumsq_out = pl.pallas_call(
        stats_kernel,
        grid=(2, tiles_per_core),
        in_specs=[
            pl.BlockSpec((tile, input_dim),
                         lambda c, i: (c * tiles_per_core + i, 0)),
            cspec2(w1c.shape), cspec2(b1f.shape),
            cspec2(w2c.shape), cspec2(b2f.shape),
        ],
        out_specs=(acc_spec, acc_spec),
        out_shape=(jax.ShapeDtypeStruct((16, 64), jnp.float32),
                   jax.ShapeDtypeStruct((16, 64), jnp.float32)),
        compiler_params=pltpu.CompilerParams(
            dimension_semantics=("parallel", "arbitrary"),
            vmem_limit_bytes=_VMEM_LIMIT),
        cost_estimate=pl.CostEstimate(
            flops=flops1, transcendentals=0,
            bytes_accessed=4 * batch_pad * input_dim + w1bytes + 2 * 16 * 64 * 4),
    )(x, w1c, b1f, w2c, b2f)

    # Reduce the per-core partial sums (row 0 of each core's (8,64) block).
    sum_h = sum_out[0:1] + sum_out[8:9]
    sumsq_h = sumsq_out[0:1] + sumsq_out[8:9]

    # ---- fold BN (biased batch variance, torch training mode) into fc3:
    #   BN(h) @ W3 + b3 == h @ (scale[:,None]*W3) + (b3 + shift @ W3)
    mean = sum_h / batch
    var = jnp.maximum(sumsq_h / batch - mean * mean, 0.0)
    scale = gamma.astype(jnp.float32) * lax.rsqrt(var + BN_EPS)     # (1,64)
    shift = beta.astype(jnp.float32) - mean * scale                 # (1,64)
    w3f32 = w3.astype(jnp.float32)
    w3c = (scale.reshape(-1, 1) * w3f32).astype(compute_dtype)      # (64,128)
    b3f = b3.astype(jnp.float32) + shift @ w3f32                    # (1,128)

    # ---- phase 2: full forward, fully parallel over batch tiles (megacore).
    mlp_kernel = functools.partial(_mlp_kernel, compute_dtype=compute_dtype)
    weights = (w1c, b1f, w2c, b2f, w3c, b3f, w4c, b4f, w5c, b5f, w6c, b6f)
    cspec1 = lambda shape: pl.BlockSpec(shape, lambda i: (0, 0))
    w2bytes = sum(int(a.size) * a.dtype.itemsize for a in weights)
    flops2 = 2 * batch_pad * (input_dim * 64 + 64 * 64 + 64 * 128
                              + 128 * h4_pad + h4_pad * 32 + 32 * 6)
    out = pl.pallas_call(
        mlp_kernel,
        grid=(num_tiles,),
        in_specs=[pl.BlockSpec((tile, input_dim), lambda i: (i, 0))]
                 + [cspec1(a.shape) for a in weights],
        out_specs=pl.BlockSpec((tile, 6), lambda i: (i, 0)),
        out_shape=jax.ShapeDtypeStruct((batch_pad, 6), jnp.float32),
        compiler_params=pltpu.CompilerParams(
            dimension_semantics=("parallel",),
            vmem_limit_bytes=_VMEM_LIMIT),
        cost_estimate=pl.CostEstimate(
            flops=flops2, transcendentals=batch_pad * 6,
            bytes_accessed=4 * batch_pad * (input_dim + 6) + w2bytes),
    )(x, *weights)
    return out[:batch]


# --------------------------------------------------------------------------- #
# Parameters / reference                                                       #
# --------------------------------------------------------------------------- #
def init_params(key, input_dim):
    """Deterministic parameter init (PyTorch Linear-style uniform ranges).

    Weights are stored as (in_features, out_features) so the kernel computes
    y = x @ W + b (equivalent to torch's x @ W.T + b)."""
    dims = [(input_dim, 64), (64, 64), (64, 128), (128, 196), (196, 32), (32, 6)]
    keys = jax.random.split(key, 2 * len(dims))
    ws_bs = []
    for i, (fan_in, fan_out) in enumerate(dims):
        bound = 1.0 / jnp.sqrt(jnp.float32(fan_in))
        w = jax.random.uniform(keys[2 * i], (fan_in, fan_out), jnp.float32,
                               minval=-bound, maxval=bound)
        b = jax.random.uniform(keys[2 * i + 1], (1, fan_out), jnp.float32,
                               minval=-bound, maxval=bound)
        ws_bs.append((w, b))
    (w1, b1), (w2, b2), (w3, b3), (w4, b4), (w5, b5), (w6, b6) = ws_bs
    gamma = jnp.ones((1, 64), jnp.float32)   # BatchNorm1d affine weight
    beta = jnp.zeros((1, 64), jnp.float32)   # BatchNorm1d affine bias
    return (w1, b1, w2, b2, gamma, beta, w3, b3, w4, b4, w5, b5, w6, b6)


def reference_forward(x, params):
    """Pure-JAX f32 reference matching the PyTorch module (training-mode BN)."""
    w1, b1, w2, b2, gamma, beta, w3, b3, w4, b4, w5, b5, w6, b6 = params
    h = jnp.maximum(x @ w1 + b1, 0.0)
    h = jnp.maximum(h @ w2 + b2, 0.0)
    mean = jnp.mean(h, axis=0, keepdims=True)
    var = jnp.mean((h - mean) ** 2, axis=0, keepdims=True)
    h = (h - mean) / jnp.sqrt(var + BN_EPS) * gamma + beta
    h = jnp.maximum(h @ w3 + b3, 0.0)
    h = jnp.maximum(h @ w4 + b4, 0.0)
    h = jnp.maximum(h @ w5 + b5, 0.0)
    return jax.nn.sigmoid(h @ w6 + b6)


if __name__ == "__main__":
    key = jax.random.PRNGKey(0)
    k_x, k_p = jax.random.split(key)

    batch, input_dim = 20, 32   # non-multiple-of-8 batch: exercises padding/masking
    x = jax.random.normal(k_x, (batch, input_dim), jnp.float32)
    params = init_params(k_p, input_dim)
    ref = reference_forward(x, params)

    # Multi-tile f32 path: exercises the split cross-tile BN reduction + row mask.
    out_f32 = jax.block_until_ready(
        mymodel_forward(x, params, tile_b=8, compute_dtype=jnp.float32))
    assert out_f32.shape == (batch, 6)
    assert jnp.allclose(out_f32, ref, atol=5e-4, rtol=5e-4), "f32 kernel mismatch"

    # Default path: bf16 matmul operands with f32 accumulation (MXU-native).
    out_bf16 = jax.block_until_ready(mymodel_forward(x, params))
    assert out_bf16.shape == (batch, 6)
    assert jnp.allclose(out_bf16, ref, atol=3e-2), "bf16 kernel mismatch"

    print("KERNEL_OK")
</pallas_src>

<mosaic_0001>
module attributes {stable_mosaic.version = 11 : i64} {
  func.func @_stats_kernel(%arg0: i32, %arg1: i32, %arg2: memref<8x32xf32, #tpu.memory_space<vmem>>, %arg3: memref<32x64xf32, #tpu.memory_space<vmem>>, %arg4: memref<1x64xf32, #tpu.memory_space<vmem>>, %arg5: memref<64x64xf32, #tpu.memory_space<vmem>>, %arg6: memref<1x64xf32, #tpu.memory_space<vmem>>, %arg7: memref<8x64xf32, #tpu.memory_space<vmem>>, %arg8: memref<8x64xf32, #tpu.memory_space<vmem>>) attributes {dimension_semantics = [#tpu.dimension_semantics<parallel>, #tpu.dimension_semantics<arbitrary>], iteration_bounds = array<i64: 2, 2>, scalar_prefetch = 0 : i64, scratch_operands = 0 : i64, tpu.core_type = #tpu.core_type<tc>, window_params = [{transform_indices = @transform_0, window_bounds = array<i64: 8, 32>}, {pipeline_mode = #tpu.pipeline_mode<synchronous>, transform_indices = @transform_1, window_bounds = array<i64: 32, 64>}, {pipeline_mode = #tpu.pipeline_mode<synchronous>, transform_indices = @transform_2, window_bounds = array<i64: 1, 64>}, {pipeline_mode = #tpu.pipeline_mode<synchronous>, transform_indices = @transform_3, window_bounds = array<i64: 64, 64>}, {pipeline_mode = #tpu.pipeline_mode<synchronous>, transform_indices = @transform_4, window_bounds = array<i64: 1, 64>}, {transform_indices = @transform_5, window_bounds = array<i64: 8, 64>}, {transform_indices = @transform_6, window_bounds = array<i64: 8, 64>}]} {
    %c0_i32 = arith.constant 0 : i32
    %0 = arith.cmpi eq, %arg1, %c0_i32 : i32
    %1 = arith.extui %0 : i1 to i32
    %c0_i32_0 = arith.constant 0 : i32
    %2 = arith.cmpi ne, %1, %c0_i32_0 : i32
    scf.if %2 {
      %cst_24 = arith.constant 0.000000e+00 : f32
      %43 = vector.broadcast %cst_24 : f32 to vector<8x64xf32>
      %c0_25 = arith.constant 0 : index
      %c0_26 = arith.constant 0 : index
      %44 = vector.load %arg7[%c0_25, %c0_26] : memref<8x64xf32, #tpu.memory_space<vmem>>, vector<8x64xf32>
      tpu.vector_store %arg7[%c0_25, %c0_26], %43 {strides = array<i32>} : memref<8x64xf32, #tpu.memory_space<vmem>>, vector<8x64xf32>,
      %cst_27 = arith.constant 0.000000e+00 : f32
      %45 = vector.broadcast %cst_27 : f32 to vector<8x64xf32>
      %c0_28 = arith.constant 0 : index
      %c0_29 = arith.constant 0 : index
      %46 = vector.load %arg8[%c0_28, %c0_29] : memref<8x64xf32, #tpu.memory_space<vmem>>, vector<8x64xf32>
      tpu.vector_store %arg8[%c0_28, %c0_29], %45 {strides = array<i32>} : memref<8x64xf32, #tpu.memory_space<vmem>>, vector<8x64xf32>,
    } else {
    }
    %c0 = arith.constant 0 : index
    %c0_1 = arith.constant 0 : index
    %3 = vector.load %arg2[%c0, %c0_1] : memref<8x32xf32, #tpu.memory_space<vmem>>, vector<8x32xf32>
    %c0_2 = arith.constant 0 : index
    %c0_3 = arith.constant 0 : index
    %4 = vector.load %arg3[%c0_2, %c0_3] : memref<32x64xf32, #tpu.memory_space<vmem>>, vector<32x64xf32>
    %cst = arith.constant dense<0.000000e+00> : vector<8x64xf32>
    %5 = tpu.matmul %3, %4, %cst {dimension_numbers = #tpu.dot_dimension_numbers<[1], [0], [0], [1], [0, 0, 1, 1], [], []>} : vector<8x32xf32>, vector<32x64xf32>, vector<8x64xf32> -> vector<8x64xf32>
    %c0_4 = arith.constant 0 : index
    %c0_5 = arith.constant 0 : index
    %6 = vector.load %arg4[%c0_4, %c0_5] : memref<1x64xf32, #tpu.memory_space<vmem>>, vector<1x64xf32>
    %7 = vector.broadcast %6 : vector<1x64xf32> to vector<8x64xf32>
    %8 = arith.addf %5, %7 : vector<8x64xf32>
    %cst_6 = arith.constant 0.000000e+00 : f32
    %9 = vector.broadcast %cst_6 : f32 to vector<8x64xf32>
    %10 = arith.maximumf %8, %9 : vector<8x64xf32>
    %c0_7 = arith.constant 0 : index
    %c0_8 = arith.constant 0 : index
    %11 = vector.load %arg5[%c0_7, %c0_8] : memref<64x64xf32, #tpu.memory_space<vmem>>, vector<64x64xf32>
    %cst_9 = arith.constant dense<0.000000e+00> : vector<8x64xf32>
    %12 = tpu.matmul %10, %11, %cst_9 {dimension_numbers = #tpu.dot_dimension_numbers<[1], [0], [0], [1], [0, 0, 1, 1], [], []>} : vector<8x64xf32>, vector<64x64xf32>, vector<8x64xf32> -> vector<8x64xf32>
    %c0_10 = arith.constant 0 : index
    %c0_11 = arith.constant 0 : index
    %13 = vector.load %arg6[%c0_10, %c0_11] : memref<1x64xf32, #tpu.memory_space<vmem>>, vector<1x64xf32>
    %14 = vector.broadcast %13 : vector<1x64xf32> to vector<8x64xf32>
    %15 = arith.addf %12, %14 : vector<8x64xf32>
    %cst_12 = arith.constant 0.000000e+00 : f32
    %16 = vector.broadcast %cst_12 : f32 to vector<8x64xf32>
    %17 = arith.maximumf %15, %16 : vector<8x64xf32>
    %c2_i32 = arith.constant 2 : i32
    %18 = arith.muli %arg0, %c2_i32 : i32
    %19 = arith.addi %18, %arg1 : i32
    %c8_i32 = arith.constant 8 : i32
    %20 = arith.muli %19, %c8_i32 : i32
    %21 = tpu.iota {dimensions = array<i32: 0>} : vector<8x1xi32>
    %22 = vector.broadcast %20 : i32 to vector<8x1xi32>
    %23 = arith.addi %22, %21 : vector<8x1xi32>
    %c20_i32 = arith.constant 20 : i32
    %24 = vector.broadcast %c20_i32 : i32 to vector<8x1xi32>
    %25 = arith.cmpi slt, %23, %24 : vector<8x1xi32>
    %cst_13 = arith.constant 0.000000e+00 : f32
    %26 = vector.shape_cast %25 : vector<8x1xi1> to vector<8x1xi1>
    %27 = vector.broadcast %26 : vector<8x1xi1> to vector<8x64xi1>
    %28 = vector.broadcast %cst_13 : f32 to vector<8x64xf32>
    %29 = arith.select %27, %17, %28 : vector<8x64xi1>, vector<8x64xf32>
    %c0_14 = arith.constant 0 : index
    %c0_15 = arith.constant 0 : index
    %30 = vector.load %arg7[%c0_14, %c0_15] : memref<8x64xf32, #tpu.memory_space<vmem>>, vector<8x64xf32>
    %cst_16 = arith.constant dense<0.000000e+00> : vector<64xf32>
    %31 = vector.multi_reduction <add>, %29, %cst_16 [0] : vector<8x64xf32> to vector<64xf32>
    %32 = vector.shape_cast %31 : vector<64xf32> to vector<1x64xf32>
    %33 = vector.broadcast %32 : vector<1x64xf32> to vector<8x64xf32>
    %34 = arith.addf %30, %33 : vector<8x64xf32>
    %c0_17 = arith.constant 0 : index
    %c0_18 = arith.constant 0 : index
    %35 = vector.load %arg7[%c0_17, %c0_18] : memref<8x64xf32, #tpu.memory_space<vmem>>, vector<8x64xf32>
    tpu.vector_store %arg7[%c0_17, %c0_18], %34 {strides = array<i32>} : memref<8x64xf32, #tpu.memory_space<vmem>>, vector<8x64xf32>,
    %c0_19 = arith.constant 0 : index
    %c0_20 = arith.constant 0 : index
    %36 = vector.load %arg8[%c0_19, %c0_20] : memref<8x64xf32, #tpu.memory_space<vmem>>, vector<8x64xf32>
    %37 = arith.mulf %29, %29 : vector<8x64xf32>
    %cst_21 = arith.constant dense<0.000000e+00> : vector<64xf32>
    %38 = vector.multi_reduction <add>, %37, %cst_21 [0] : vector<8x64xf32> to vector<64xf32>
    %39 = vector.shape_cast %38 : vector<64xf32> to vector<1x64xf32>
    %40 = vector.broadcast %39 : vector<1x64xf32> to vector<8x64xf32>
    %41 = arith.addf %36, %40 : vector<8x64xf32>
    %c0_22 = arith.constant 0 : index
    %c0_23 = arith.constant 0 : index
    %42 = vector.load %arg8[%c0_22, %c0_23] : memref<8x64xf32, #tpu.memory_space<vmem>>, vector<8x64xf32>
    tpu.vector_store %arg8[%c0_22, %c0_23], %41 {strides = array<i32>} : memref<8x64xf32, #tpu.memory_space<vmem>>, vector<8x64xf32>,
    return
  }
  func.func @transform_0(%arg0: i32, %arg1: i32) -> (i32, i32) {
    %c2_i32 = arith.constant 2 : i32
    %0 = arith.muli %arg0, %c2_i32 : i32
    %1 = arith.addi %0, %arg1 : i32
    %c0_i32 = arith.constant 0 : i32
    %c0_i32_0 = arith.constant 0 : i32
    return %1, %c0_i32 : i32, i32
  }
  func.func @transform_1(%arg0: i32, %arg1: i32) -> (i32, i32) {
    %c0_i32 = arith.constant 0 : i32
    %c0_i32_0 = arith.constant 0 : i32
    %c0_i32_1 = arith.constant 0 : i32
    return %c0_i32, %c0_i32_0 : i32, i32
  }
  func.func @transform_2(%arg0: i32, %arg1: i32) -> (i32, i32) {
    %c0_i32 = arith.constant 0 : i32
    %c0_i32_0 = arith.constant 0 : i32
    %c0_i32_1 = arith.constant 0 : i32
    return %c0_i32, %c0_i32_0 : i32, i32
  }
  func.func @transform_3(%arg0: i32, %arg1: i32) -> (i32, i32) {
    %c0_i32 = arith.constant 0 : i32
    %c0_i32_0 = arith.constant 0 : i32
    %c0_i32_1 = arith.constant 0 : i32
    return %c0_i32, %c0_i32_0 : i32, i32
  }
  func.func @transform_4(%arg0: i32, %arg1: i32) -> (i32, i32) {
    %c0_i32 = arith.constant 0 : i32
    %c0_i32_0 = arith.constant 0 : i32
    %c0_i32_1 = arith.constant 0 : i32
    return %c0_i32, %c0_i32_0 : i32, i32
  }
  func.func @transform_5(%arg0: i32, %arg1: i32) -> (i32, i32) {
    %c0_i32 = arith.constant 0 : i32
    %c0_i32_0 = arith.constant 0 : i32
    return %arg0, %c0_i32 : i32, i32
  }
  func.func @transform_6(%arg0: i32, %arg1: i32) -> (i32, i32) {
    %c0_i32 = arith.constant 0 : i32
    %c0_i32_0 = arith.constant 0 : i32
    return %arg0, %c0_i32 : i32, i32
  }
}

module attributes {stable_mosaic.version = 11 : i64} {
  func.func @_mlp_kernel(%arg0: i32, %arg1: memref<8x32xf32, #tpu.memory_space<vmem>>, %arg2: memref<32x64xf32, #tpu.memory_space<vmem>>, %arg3: memref<1x64xf32, #tpu.memory_space<vmem>>, %arg4: memref<64x64xf32, #tpu.memory_space<vmem>>, %arg5: memref<1x64xf32, #tpu.memory_space<vmem>>, %arg6: memref<64x128xf32, #tpu.memory_space<vmem>>, %arg7: memref<1x128xf32, #tpu.memory_space<vmem>>, %arg8: memref<128x256xf32, #tpu.memory_space<vmem>>, %arg9: memref<1x256xf32, #tpu.memory_space<vmem>>, %arg10: memref<256x32xf32, #tpu.memory_space<vmem>>, %arg11: memref<1x32xf32, #tpu.memory_space<vmem>>, %arg12: memref<32x6xf32, #tpu.memory_space<vmem>>, %arg13: memref<1x6xf32, #tpu.memory_space<vmem>>, %arg14: memref<8x6xf32, #tpu.memory_space<vmem>>) attributes {dimension_semantics = [#tpu.dimension_semantics<parallel>], iteration_bounds = array<i64: 4>, scalar_prefetch = 0 : i64, scratch_operands = 0 : i64, tpu.core_type = #tpu.core_type<tc>, window_params = [{transform_indices = @transform_0, window_bounds = array<i64: 8, 32>}, {pipeline_mode = #tpu.pipeline_mode<synchronous>, transform_indices = @transform_1, window_bounds = array<i64: 32, 64>}, {pipeline_mode = #tpu.pipeline_mode<synchronous>, transform_indices = @transform_2, window_bounds = array<i64: 1, 64>}, {pipeline_mode = #tpu.pipeline_mode<synchronous>, transform_indices = @transform_3, window_bounds = array<i64: 64, 64>}, {pipeline_mode = #tpu.pipeline_mode<synchronous>, transform_indices = @transform_4, window_bounds = array<i64: 1, 64>}, {pipeline_mode = #tpu.pipeline_mode<synchronous>, transform_indices = @transform_5, window_bounds = array<i64: 64, 128>}, {pipeline_mode = #tpu.pipeline_mode<synchronous>, transform_indices = @transform_6, window_bounds = array<i64: 1, 128>}, {pipeline_mode = #tpu.pipeline_mode<synchronous>, transform_indices = @transform_7, window_bounds = array<i64: 128, 256>}, {pipeline_mode = #tpu.pipeline_mode<synchronous>, transform_indices = @transform_8, window_bounds = array<i64: 1, 256>}, {pipeline_mode = #tpu.pipeline_mode<synchronous>, transform_indices = @transform_9, window_bounds = array<i64: 256, 32>}, {pipeline_mode = #tpu.pipeline_mode<synchronous>, transform_indices = @transform_10, window_bounds = array<i64: 1, 32>}, {pipeline_mode = #tpu.pipeline_mode<synchronous>, transform_indices = @transform_11, window_bounds = array<i64: 32, 6>}, {pipeline_mode = #tpu.pipeline_mode<synchronous>, transform_indices = @transform_12, window_bounds = array<i64: 1, 6>}, {transform_indices = @transform_13, window_bounds = array<i64: 8, 6>}]} {
    %c0 = arith.constant 0 : index
    %c0_0 = arith.constant 0 : index
    %0 = vector.load %arg1[%c0, %c0_0] : memref<8x32xf32, #tpu.memory_space<vmem>>, vector<8x32xf32>
    %c0_1 = arith.constant 0 : index
    %c0_2 = arith.constant 0 : index
    %1 = vector.load %arg2[%c0_1, %c0_2] : memref<32x64xf32, #tpu.memory_space<vmem>>, vector<32x64xf32>
    %cst = arith.constant dense<0.000000e+00> : vector<8x64xf32>
    %2 = tpu.matmul %0, %1, %cst {dimension_numbers = #tpu.dot_dimension_numbers<[1], [0], [0], [1], [0, 0, 1, 1], [], []>} : vector<8x32xf32>, vector<32x64xf32>, vector<8x64xf32> -> vector<8x64xf32>
    %c0_3 = arith.constant 0 : index
    %c0_4 = arith.constant 0 : index
    %3 = vector.load %arg3[%c0_3, %c0_4] : memref<1x64xf32, #tpu.memory_space<vmem>>, vector<1x64xf32>
    %4 = vector.broadcast %3 : vector<1x64xf32> to vector<8x64xf32>
    %5 = arith.addf %2, %4 : vector<8x64xf32>
    %cst_5 = arith.constant 0.000000e+00 : f32
    %6 = vector.broadcast %cst_5 : f32 to vector<8x64xf32>
    %7 = arith.maximumf %5, %6 : vector<8x64xf32>
    %c0_6 = arith.constant 0 : index
    %c0_7 = arith.constant 0 : index
    %8 = vector.load %arg4[%c0_6, %c0_7] : memref<64x64xf32, #tpu.memory_space<vmem>>, vector<64x64xf32>
    %cst_8 = arith.constant dense<0.000000e+00> : vector<8x64xf32>
    %9 = tpu.matmul %7, %8, %cst_8 {dimension_numbers = #tpu.dot_dimension_numbers<[1], [0], [0], [1], [0, 0, 1, 1], [], []>} : vector<8x64xf32>, vector<64x64xf32>, vector<8x64xf32> -> vector<8x64xf32>
    %c0_9 = arith.constant 0 : index
    %c0_10 = arith.constant 0 : index
    %10 = vector.load %arg5[%c0_9, %c0_10] : memref<1x64xf32, #tpu.memory_space<vmem>>, vector<1x64xf32>
    %11 = vector.broadcast %10 : vector<1x64xf32> to vector<8x64xf32>
    %12 = arith.addf %9, %11 : vector<8x64xf32>
    %cst_11 = arith.constant 0.000000e+00 : f32
    %13 = vector.broadcast %cst_11 : f32 to vector<8x64xf32>
    %14 = arith.maximumf %12, %13 : vector<8x64xf32>
    %c0_12 = arith.constant 0 : index
    %c0_13 = arith.constant 0 : index
    %15 = vector.load %arg6[%c0_12, %c0_13] : memref<64x128xf32, #tpu.memory_space<vmem>>, vector<64x128xf32>
    %cst_14 = arith.constant dense<0.000000e+00> : vector<8x128xf32>
    %16 = tpu.matmul %14, %15, %cst_14 {dimension_numbers = #tpu.dot_dimension_numbers<[1], [0], [0], [1], [0, 0, 1, 1], [], []>} : vector<8x64xf32>, vector<64x128xf32>, vector<8x128xf32> -> vector<8x128xf32>
    %c0_15 = arith.constant 0 : index
    %c0_16 = arith.constant 0 : index
    %17 = vector.load %arg7[%c0_15, %c0_16] : memref<1x128xf32, #tpu.memory_space<vmem>>, vector<1x128xf32>
    %18 = vector.broadcast %17 : vector<1x128xf32> to vector<8x128xf32>
    %19 = arith.addf %16, %18 : vector<8x128xf32>
    %cst_17 = arith.constant 0.000000e+00 : f32
    %20 = vector.broadcast %cst_17 : f32 to vector<8x128xf32>
    %21 = arith.maximumf %19, %20 : vector<8x128xf32>
    %c0_18 = arith.constant 0 : index
    %c0_19 = arith.constant 0 : index
    %22 = vector.load %arg8[%c0_18, %c0_19] : memref<128x256xf32, #tpu.memory_space<vmem>>, vector<128x256xf32>
    %cst_20 = arith.constant dense<0.000000e+00> : vector<8x256xf32>
    %23 = tpu.matmul %21, %22, %cst_20 {dimension_numbers = #tpu.dot_dimension_numbers<[1], [0], [0], [1], [0, 0, 1, 1], [], []>} : vector<8x128xf32>, vector<128x256xf32>, vector<8x256xf32> -> vector<8x256xf32>
    %c0_21 = arith.constant 0 : index
    %c0_22 = arith.constant 0 : index
    %24 = vector.load %arg9[%c0_21, %c0_22] : memref<1x256xf32, #tpu.memory_space<vmem>>, vector<1x256xf32>
    %25 = vector.broadcast %24 : vector<1x256xf32> to vector<8x256xf32>
    %26 = arith.addf %23, %25 : vector<8x256xf32>
    %cst_23 = arith.constant 0.000000e+00 : f32
    %27 = vector.broadcast %cst_23 : f32 to vector<8x256xf32>
    %28 = arith.maximumf %26, %27 : vector<8x256xf32>
    %c0_24 = arith.constant 0 : index
    %c0_25 = arith.constant 0 : index
    %29 = vector.load %arg10[%c0_24, %c0_25] : memref<256x32xf32, #tpu.memory_space<vmem>>, vector<256x32xf32>
    %cst_26 = arith.constant dense<0.000000e+00> : vector<8x32xf32>
    %30 = tpu.matmul %28, %29, %cst_26 {dimension_numbers = #tpu.dot_dimension_numbers<[1], [0], [0], [1], [0, 0, 1, 1], [], []>} : vector<8x256xf32>, vector<256x32xf32>, vector<8x32xf32> -> vector<8x32xf32>
    %c0_27 = arith.constant 0 : index
    %c0_28 = arith.constant 0 : index
    %31 = vector.load %arg11[%c0_27, %c0_28] : memref<1x32xf32, #tpu.memory_space<vmem>>, vector<1x32xf32>
    %32 = vector.broadcast %31 : vector<1x32xf32> to vector<8x32xf32>
    %33 = arith.addf %30, %32 : vector<8x32xf32>
    %cst_29 = arith.constant 0.000000e+00 : f32
    %34 = vector.broadcast %cst_29 : f32 to vector<8x32xf32>
    %35 = arith.maximumf %33, %34 : vector<8x32xf32>
    %c0_30 = arith.constant 0 : index
    %c0_31 = arith.constant 0 : index
    %36 = vector.load %arg12[%c0_30, %c0_31] : memref<32x6xf32, #tpu.memory_space<vmem>>, vector<32x6xf32>
    %cst_32 = arith.constant dense<0.000000e+00> : vector<8x6xf32>
    %37 = tpu.matmul %35, %36, %cst_32 {dimension_numbers = #tpu.dot_dimension_numbers<[1], [0], [0], [1], [0, 0, 1, 1], [], []>} : vector<8x32xf32>, vector<32x6xf32>, vector<8x6xf32> -> vector<8x6xf32>
    %c0_33 = arith.constant 0 : index
    %c0_34 = arith.constant 0 : index
    %38 = vector.load %arg13[%c0_33, %c0_34] : memref<1x6xf32, #tpu.memory_space<vmem>>, vector<1x6xf32>
    %39 = vector.broadcast %38 : vector<1x6xf32> to vector<8x6xf32>
    %40 = arith.addf %37, %39 : vector<8x6xf32>
    %41 = arith.negf %40 : vector<8x6xf32>
    %42 = math.exp %41 : vector<8x6xf32>
    %cst_35 = arith.constant 1.000000e+00 : f32
    %43 = vector.broadcast %cst_35 : f32 to vector<8x6xf32>
    %44 = arith.addf %43, %42 : vector<8x6xf32>
    %45 = arith.divf %43, %44 : vector<8x6xf32>
    %c0_36 = arith.constant 0 : index
    %c0_37 = arith.constant 0 : index
    %46 = vector.load %arg14[%c0_36, %c0_37] : memref<8x6xf32, #tpu.memory_space<vmem>>, vector<8x6xf32>
    tpu.vector_store %arg14[%c0_36, %c0_37], %45 {strides = array<i32>} : memref<8x6xf32, #tpu.memory_space<vmem>>, vector<8x6xf32>,
    return
  }
  func.func @transform_0(%arg0: i32) -> (i32, i32) {
    %c0_i32 = arith.constant 0 : i32
    %c0_i32_0 = arith.constant 0 : i32
    return %arg0, %c0_i32 : i32, i32
  }
  func.func @transform_1(%arg0: i32) -> (i32, i32) {
    %c0_i32 = arith.constant 0 : i32
    %c0_i32_0 = arith.constant 0 : i32
    %c0_i32_1 = arith.constant 0 : i32
    return %c0_i32, %c0_i32_0 : i32, i32
  }
  func.func @transform_2(%arg0: i32) -> (i32, i32) {
    %c0_i32 = arith.constant 0 : i32
    %c0_i32_0 = arith.constant 0 : i32
    %c0_i32_1 = arith.constant 0 : i32
    return %c0_i32, %c0_i32_0 : i32, i32
  }
  func.func @transform_3(%arg0: i32) -> (i32, i32) {
    %c0_i32 = arith.constant 0 : i32
    %c0_i32_0 = arith.constant 0 : i32
    %c0_i32_1 = arith.constant 0 : i32
    return %c0_i32, %c0_i32_0 : i32, i32
  }
  func.func @transform_4(%arg0: i32) -> (i32, i32) {
    %c0_i32 = arith.constant 0 : i32
    %c0_i32_0 = arith.constant 0 : i32
    %c0_i32_1 = arith.constant 0 : i32
    return %c0_i32, %c0_i32_0 : i32, i32
  }
  func.func @transform_5(%arg0: i32) -> (i32, i32) {
    %c0_i32 = arith.constant 0 : i32
    %c0_i32_0 = arith.constant 0 : i32
    %c0_i32_1 = arith.constant 0 : i32
    return %c0_i32, %c0_i32_0 : i32, i32
  }
  func.func @transform_6(%arg0: i32) -> (i32, i32) {
    %c0_i32 = arith.constant 0 : i32
    %c0_i32_0 = arith.constant 0 : i32
    %c0_i32_1 = arith.constant 0 : i32
    return %c0_i32, %c0_i32_0 : i32, i32
  }
  func.func @transform_7(%arg0: i32) -> (i32, i32) {
    %c0_i32 = arith.constant 0 : i32
    %c0_i32_0 = arith.constant 0 : i32
    %c0_i32_1 = arith.constant 0 : i32
    return %c0_i32, %c0_i32_0 : i32, i32
  }
  func.func @transform_8(%arg0: i32) -> (i32, i32) {
    %c0_i32 = arith.constant 0 : i32
    %c0_i32_0 = arith.constant 0 : i32
    %c0_i32_1 = arith.constant 0 : i32
    return %c0_i32, %c0_i32_0 : i32, i32
  }
  func.func @transform_9(%arg0: i32) -> (i32, i32) {
    %c0_i32 = arith.constant 0 : i32
    %c0_i32_0 = arith.constant 0 : i32
    %c0_i32_1 = arith.constant 0 : i32
    return %c0_i32, %c0_i32_0 : i32, i32
  }
  func.func @transform_10(%arg0: i32) -> (i32, i32) {
    %c0_i32 = arith.constant 0 : i32
    %c0_i32_0 = arith.constant 0 : i32
    %c0_i32_1 = arith.constant 0 : i32
    return %c0_i32, %c0_i32_0 : i32, i32
  }
  func.func @transform_11(%arg0: i32) -> (i32, i32) {
    %c0_i32 = arith.constant 0 : i32
    %c0_i32_0 = arith.constant 0 : i32
    %c0_i32_1 = arith.constant 0 : i32
    return %c0_i32, %c0_i32_0 : i32, i32
  }
  func.func @transform_12(%arg0: i32) -> (i32, i32) {
    %c0_i32 = arith.constant 0 : i32
    %c0_i32_0 = arith.constant 0 : i32
    %c0_i32_1 = arith.constant 0 : i32
    return %c0_i32, %c0_i32_0 : i32, i32
  }
  func.func @transform_13(%arg0: i32) -> (i32, i32) {
    %c0_i32 = arith.constant 0 : i32
    %c0_i32_0 = arith.constant 0 : i32
    return %arg0, %c0_i32 : i32, i32
  }
}

</mosaic_0001>

<llo_original>
// kernel: mymodel_forward.2
$region0: #{mymodel_forward.2}
  #allocation0 [shape = 'u32[]', space=smem, size = 0x4, offset = 0x4, fixed_abs, tag = 'smem constant byte address 0x4 - core index']
  #allocation1 [shape = 'u32[144,128]{1,0:T(1,128)}', space=vmem, size = 0x12000, scoped, tag = 'internal scratch']
  %s0 = inlined_call_operand.vmem [shape: f32[32,32], index: 0, kind: input, shape index: {}]
  %s1 = inlined_call_operand.hbm [shape: f32[32,64], index: 1, kind: input, shape index: {}]
  %s2 = inlined_call_operand.vmem [shape: f32[1,64], index: 2, kind: input, shape index: {}]
  %s3 = inlined_call_operand.vmem [shape: f32[64,64], index: 3, kind: input, shape index: {}]
  %s4 = inlined_call_operand.vmem [shape: f32[1,64], index: 4, kind: input, shape index: {}]
  %s5 = inlined_call_operand.vmem [shape: f32[16,64], index: 5, kind: output, shape index: {0}]
  %s6 = inlined_call_operand.vmem [shape: f32[16,64], index: 6, kind: output, shape index: {1}]
  %7 = xla_tuple %s5, %s6
  %s8 = sld [smem:[#allocation0]]
  $region69: #{mymodel_forward.2} parent=0
    _
  %s10 = ssub.s32 1, %s8
  %s11 = scalar_select 0, %s10, %s8
  $region1: #{mymodel_forward.2} parent=0
    #allocation2 [shape = 'u8[16384]{0}', space=vmem, size = 0x4000, scoped, tag = 'input window, operand 1, single buffered']
    #allocation3 [shape = 's32[2]{0}', space=sflag, size = 0x8, scoped, tag = 'scoped memory for mymodel_forward.2']
    %12 = vsyncpa [#allocation3], 0
    loop: start=0, step=1, limit=6
    $region2: #{mymodel_forward.2} parent=1 // loop_pre_header
      _
    $region3: #{mymodel_forward.2} parent=1 // loop_header
      %s14 = sphi 0, %s18
      %p15 = scmp.ge.s32.totalorder %s14, 6
      %s21 = sphi 0, %s33
      %s22 = sphi 0, %s29
      %s23 = sphi 0, %s21
      %s24 = sphi 0, %s22
      %s25 = sphi 0, %s23
      %s26 = sphi 0, %s24
      %s40 = sphi 0, %s42
      %s43 = sphi 0, %s40
      %s44 = sphi 0, %s43
      %s60 = sphi 0, %s44
      %s64 = sphi 0, %s64
      %s66 = sphi 0, %s64
      %s67 = sphi 0, %s66
      %s81 = sphi 0, %s67
      %s85 = sphi 0, %s85
      %s87 = sphi 0, %s85
      %s88 = sphi 0, %s87
      %s102 = sphi 0, %s88
      %s106 = sphi 0, %s106
      %s108 = sphi 0, %s106
      %s109 = sphi 0, %s108
      %s123 = sphi 0, %s109
      %s127 = sphi 0, %s127
      %s129 = sphi 0, %s127
      %s130 = sphi 0, %s129
      %s144 = sphi 0, %s130
      %s150 = sphi 0, %s152
      %s153 = sphi 0, %s150
      %s154 = sphi 0, %s153
      %s170 = sphi 0, %s154
      %s176 = sphi 0, %s178
      %s179 = sphi 0, %s176
      %s180 = sphi 0, %s179
      %s196 = sphi 0, %s180
    $region4: #{mymodel_forward.2} parent=1 // loop_header_branch
      %17 = sbr.rel (%p15) target = $region8
    $region5: #{mymodel_forward.2} parent=1 // loop_body
      %s19 = ssub.s32 %s14, 1
      %s20 = ssub.s32 %s14, 2
      %s27 = sadd.s32 1, %s22
      %p28 = scmp.ge.s32.totalorder %s27, 2
      %s29 = scalar_select %p28, 0, %s27
      %s30 = sadd.s32 1, %s21
      %s31 = scalar_select %p28, %s30, %s21
      %p32 = scmp.ge.s32.totalorder %s31, 2
      %s33 = scalar_select %p32, 0, %s31
      %s34 = smul.u32 %s21, 2
      %s35 = sadd.s32 %s34, %s22
      %s36 = smul.u32 %s33, 2
      %s37 = sadd.s32 %s36, %s29
      %s38 = ssub.s32 %s35, %s37
      %p39 = scmp.eq.s32.totalorder %s38, 0
      %s41 = sadd.s32 %s40, 1
      %s42 = scalar_select %p39, %s40, %s41
      %p45 = pneg %p39
      %p46 = scmp.eq.s32.totalorder %s14, 3
      %p47 = por %p45, %p46
      %p48 = scmp.ne.s32.totalorder %s40, %s43
      %p49 = scmp.eq.s32.totalorder %s14, 0
      %p50 = por %p48, %p49
      %p51 = scmp.ne.s32.totalorder %s40, %s43
      %p52 = scmp.eq.s32.totalorder %s19, 3
      %p53 = por %p51, %p52
      %p54 = scmp.ne.s32.totalorder %s43, %s44
      %p55 = scmp.eq.s32.totalorder %s19, 0
      %p56 = por %p54, %p55
      %p57 = scmp.ne.s32.totalorder %s43, %s44
      %p58 = scmp.eq.s32.totalorder %s20, 3
      %p59 = por %p57, %p58
      %p61 = scmp.ne.s32.totalorder %s44, %s60
      %p62 = scmp.eq.s32.totalorder %s20, 0
      %p63 = por %p61, %p62
      %s65 = sadd.s32 %s64, 1
      %p68 = scmp.eq.s32.totalorder %s14, 3
      %p69 = scmp.ne.s32.totalorder %s64, %s66
      %p70 = scmp.eq.s32.totalorder %s14, 0
      %p71 = por %p69, %p70
      %p72 = scmp.ne.s32.totalorder %s64, %s66
      %p73 = scmp.eq.s32.totalorder %s19, 3
      %p74 = por %p72, %p73
      %p75 = scmp.ne.s32.totalorder %s66, %s67
      %p76 = scmp.eq.s32.totalorder %s19, 0
      %p77 = por %p75, %p76
      %p78 = scmp.ne.s32.totalorder %s66, %s67
      %p79 = scmp.eq.s32.totalorder %s20, 3
      %p80 = por %p78, %p79
      %p82 = scmp.ne.s32.totalorder %s67, %s81
      %p83 = scmp.eq.s32.totalorder %s20, 0
      %p84 = por %p82, %p83
      %s86 = sadd.s32 %s85, 1
      %p89 = scmp.eq.s32.totalorder %s14, 3
      %p90 = scmp.ne.s32.totalorder %s85, %s87
      %p91 = scmp.eq.s32.totalorder %s14, 0
      %p92 = por %p90, %p91
      %p93 = scmp.ne.s32.totalorder %s85, %s87
      %p94 = scmp.eq.s32.totalorder %s19, 3
      %p95 = por %p93, %p94
      %p96 = scmp.ne.s32.totalorder %s87, %s88
      %p97 = scmp.eq.s32.totalorder %s19, 0
      %p98 = por %p96, %p97
      %p99 = scmp.ne.s32.totalorder %s87, %s88
      %p100 = scmp.eq.s32.totalorder %s20, 3
      %p101 = por %p99, %p100
      %p103 = scmp.ne.s32.totalorder %s88, %s102
      %p104 = scmp.eq.s32.totalorder %s20, 0
      %p105 = por %p103, %p104
      %s107 = sadd.s32 %s106, 1
      %p110 = scmp.eq.s32.totalorder %s14, 3
      %p111 = scmp.ne.s32.totalorder %s106, %s108
      %p112 = scmp.eq.s32.totalorder %s14, 0
      %p113 = por %p111, %p112
      %p114 = scmp.ne.s32.totalorder %s106, %s108
      %p115 = scmp.eq.s32.totalorder %s19, 3
      %p116 = por %p114, %p115
      %p117 = scmp.ne.s32.totalorder %s108, %s109
      %p118 = scmp.eq.s32.totalorder %s19, 0
      %p119 = por %p117, %p118
      %p120 = scmp.ne.s32.totalorder %s108, %s109
      %p121 = scmp.eq.s32.totalorder %s20, 3
      %p122 = por %p120, %p121
      %p124 = scmp.ne.s32.totalorder %s109, %s123
      %p125 = scmp.eq.s32.totalorder %s20, 0
      %p126 = por %p124, %p125
      %s128 = sadd.s32 %s127, 1
      %p131 = scmp.eq.s32.totalorder %s14, 3
      %p132 = scmp.ne.s32.totalorder %s127, %s129
      %p133 = scmp.eq.s32.totalorder %s14, 0
      %p134 = por %p132, %p133
      %p135 = scmp.ne.s32.totalorder %s127, %s129
      %p136 = scmp.eq.s32.totalorder %s19, 3
      %p137 = por %p135, %p136
      %p138 = scmp.ne.s32.totalorder %s129, %s130
      %p139 = scmp.eq.s32.totalorder %s19, 0
      %p140 = por %p138, %p139
      %p141 = scmp.ne.s32.totalorder %s129, %s130
      %p142 = scmp.eq.s32.totalorder %s20, 3
      %p143 = por %p141, %p142
      %p145 = scmp.ne.s32.totalorder %s130, %s144
      %p146 = scmp.eq.s32.totalorder %s20, 0
      %p147 = por %p145, %p146
      %s148 = ssub.s32 %s21, %s33
      %p149 = scmp.eq.s32.totalorder %s148, 0
      %s151 = sadd.s32 %s150, 1
      %s152 = scalar_select %p149, %s150, %s151
      %p155 = pneg %p149
      %p156 = scmp.eq.s32.totalorder %s14, 3
      %p157 = por %p155, %p156
      %p158 = scmp.ne.s32.totalorder %s150, %s153
      %p159 = scmp.eq.s32.totalorder %s14, 0
      %p160 = por %p158, %p159
      %p161 = scmp.ne.s32.totalorder %s150, %s153
      %p162 = scmp.eq.s32.totalorder %s19, 3
      %p163 = por %p161, %p162
      %p164 = scmp.ne.s32.totalorder %s153, %s154
      %p165 = scmp.eq.s32.totalorder %s19, 0
      %p166 = por %p164, %p165
      %p167 = scmp.ne.s32.totalorder %s153, %s154
      %p168 = scmp.eq.s32.totalorder %s20, 3
      %p169 = por %p167, %p168
      %p171 = scmp.ne.s32.totalorder %s154, %s170
      %p172 = scmp.eq.s32.totalorder %s20, 0
      %p173 = por %p171, %p172
      %s174 = ssub.s32 %s21, %s33
      %p175 = scmp.eq.s32.totalorder %s174, 0
      %s177 = sadd.s32 %s176, 1
      %s178 = scalar_select %p175, %s176, %s177
      %p181 = pneg %p175
      %p182 = scmp.eq.s32.totalorder %s14, 3
      %p183 = por %p181, %p182
      %p184 = scmp.ne.s32.totalorder %s176, %s179
      %p185 = scmp.eq.s32.totalorder %s14, 0
      %p186 = por %p184, %p185
      %p187 = scmp.ne.s32.totalorder %s176, %s179
      %p188 = scmp.eq.s32.totalorder %s19, 3
      %p189 = por %p187, %p188
      %p190 = scmp.ne.s32.totalorder %s179, %s180
      %p191 = scmp.eq.s32.totalorder %s19, 0
      %p192 = por %p190, %p191
      %p193 = scmp.ne.s32.totalorder %s179, %s180
      %p194 = scmp.eq.s32.totalorder %s20, 3
      %p195 = por %p193, %p194
      %p197 = scmp.ne.s32.totalorder %s180, %s196
      %p198 = scmp.eq.s32.totalorder %s20, 0
      %p199 = por %p197, %p198
      %p200 = scmp.le.s32.totalorder 1, %s14
      %p201 = scmp.lt.s32.totalorder %s14, 5
      %p202 = pnand %p200, %p201
      %p203 = pneg %p202
      // Predicated region
      $region9: #{mymodel_forward.2} parent=5 // pred_check
        _
      $region10: #{mymodel_forward.2} parent=5 // pred_check_branch
        %205 = sbr.rel (%p202) target = $region12
      $region11: #{mymodel_forward.2} parent=5 // pred_region
        %s206 = ssub.s32 %s14, 1
        // Predicated region
        $region13: #{mymodel_forward.2} parent=11 // pred_check
          %p207 = pneg %p77
        $region14: #{mymodel_forward.2} parent=11 // pred_check_branch
          %209 = sbr.rel (%p207) target = $region16
        $region15: #{mymodel_forward.2} parent=11 // pred_region
          %s211 = ssub.s32 512, 512
          %212 = vsyncadd [#allocation3], %s211
          %s213 = sshll.u32 [#allocation2], 4
          %s214 = int_to_ptr.vmem [resolvable:$true] %s213
          %219 = dma.hbm_to_vmem [thread:$0]  %s1, 512, %s214, [#allocation3], 128, 128, 8
        $region16: #{mymodel_forward.2} parent=11 // pred_fallthru
          _
        // Predicated region
        $region17: #{mymodel_forward.2} parent=11 // pred_check
          %p220 = pneg %p98
        $region18: #{mymodel_forward.2} parent=11 // pred_check_branch
          %222 = sbr.rel (%p220) target = $region20
        $region19: #{mymodel_forward.2} parent=11 // pred_region
          _
        $region20: #{mymodel_forward.2} parent=11 // pred_fallthru
          _
        // Predicated region
        $region21: #{mymodel_forward.2} parent=11 // pred_check
          %p223 = pneg %p119
        $region22: #{mymodel_forward.2} parent=11 // pred_check_branch
          %225 = sbr.rel (%p223) target = $region24
        $region23: #{mymodel_forward.2} parent=11 // pred_region
          _
        $region24: #{mymodel_forward.2} parent=11 // pred_fallthru
          _
        // Predicated region
        $region25: #{mymodel_forward.2} parent=11 // pred_check
          %p226 = pneg %p140
        $region26: #{mymodel_forward.2} parent=11 // pred_check_branch
          %228 = sbr.rel (%p226) target = $region28
        $region27: #{mymodel_forward.2} parent=11 // pred_region
          _
        $region28: #{mymodel_forward.2} parent=11 // pred_fallthru
          _
      $region12: #{mymodel_forward.2} parent=5 // pred_fallthru
        _
      %p229 = scmp.lt.s32.totalorder %s14, 4
      // Predicated region
      $region29: #{mymodel_forward.2} parent=5 // pred_check
        %p230 = pneg %p229
      $region30: #{mymodel_forward.2} parent=5 // pred_check_branch
        %232 = sbr.rel (%p230) target = $region32
      $region31: #{mymodel_forward.2} parent=5 // pred_region
        // Predicated region
        $region33: #{mymodel_forward.2} parent=31 // pred_check
          %p233 = pneg %p50
        $region34: #{mymodel_forward.2} parent=31 // pred_check_branch
          %235 = sbr.rel (%p233) target = $region36
        $region35: #{mymodel_forward.2} parent=31 // pred_region
          %s236 = smul.u32 %s21, 2
          %s237 = sadd.s32 %s236, %s22
          %p238 = scmp.lt.s32.totalorder %s237, 3
          %s239 = scalar_select %p238, %s237, 3
          %s240 = smul.addr %s239, 8
          %s241 = scalar_lea.vmem %s0, %s240
          %s242 = smul.u32 %s21, 2
          %s243 = sadd.s32 %s242, %s22
        $region36: #{mymodel_forward.2} parent=31 // pred_fallthru
          _
      $region32: #{mymodel_forward.2} parent=5 // pred_fallthru
        _
      %p244 = scmp.le.s32.totalorder 1, %s14
      %p245 = scmp.lt.s32.totalorder %s14, 5
      %p246 = pnand %p244, %p245
      %p247 = pneg %p246
      // Predicated region
      $region37: #{mymodel_forward.2} parent=5 // pred_check
        _
      $region38: #{mymodel_forward.2} parent=5 // pred_check_branch
        %249 = sbr.rel (%p246) target = $region40
      $region39: #{mymodel_forward.2} parent=5 // pred_region
        %s250 = ssub.s32 %s14, 1
        // Predicated region
        $region41: #{mymodel_forward.2} parent=39 // pred_check
          %p251 = pneg %p77
        $region42: #{mymodel_forward.2} parent=39 // pred_check_branch
          %253 = sbr.rel (%p251) target = $region44
        $region43: #{mymodel_forward.2} parent=39 // pred_region
          %254 = dma.done [#allocation3], 512
        $region44: #{mymodel_forward.2} parent=39 // pred_fallthru
          _
        %s255 = smul.u32 %s23, 2
        %s256 = sadd.s32 %s255, %s24
        %p257 = scmp.lt.s32.totalorder %s256, 3
        %s258 = scalar_select %p257, %s256, 3
        %s259 = smul.addr %s258, 8
        %s260 = scalar_lea.vmem %s0, %s259
        %p261 = pneg %p56
        %p262 = pneg %p53
        %p263 = pneg %p77
        %p264 = pneg %p74
        %p265 = pneg %p98
        %p266 = pneg %p95
        %p267 = pneg %p119
        %p268 = pneg %p116
        %p269 = pneg %p140
        %p270 = pneg %p137
        %p271 = pneg %p166
        %p272 = pneg %p163
        %p273 = scmp.lt.s32.totalorder %s23, 1
        %s274 = scalar_select %p273, %s23, 1
        %s275 = smul.addr %s274, 8
        %s276 = scalar_lea.vmem %s5, %s275
        %p277 = pneg %p192
        %p278 = pneg %p189
        %p279 = scmp.lt.s32.totalorder %s23, 1
        %s280 = scalar_select %p279, %s23, 1
        %s281 = smul.addr %s280, 8
        %s282 = scalar_lea.vmem %s6, %s281
        %s283 = smul.u32 %s23, 2
        %s284 = sadd.s32 %s283, %s24
        %p285 = scmp.lt.s32.totalorder %s284, 3
        %s286 = scalar_select %p285, %s284, 3
        %s287 = smul.addr %s286, 8
        %s288 = scalar_lea.vmem %s0, %s287
        %s289 = smul.u32 %s23, 2
        %s290 = sadd.s32 %s289, %s24
        %p291 = scmp.lt.s32.totalorder %s23, 1
        %s292 = scalar_select %p291, %s23, 1
        %s293 = smul.addr %s292, 8
        %s294 = scalar_lea.vmem %s5, %s293
        %p295 = scmp.lt.s32.totalorder %s23, 1
        %s296 = scalar_select %p295, %s23, 1
        %s297 = smul.addr %s296, 8
        %s298 = scalar_lea.vmem %s6, %s297
        %p299 = scmp.eq.s32.totalorder %s24, 0
        // Predicated region
        $region45: #{mymodel_forward.2} parent=39 // pred_check
          %p300 = pneg %p299
        $region46: #{mymodel_forward.2} parent=39 // pred_check_branch
          %302 = sbr.rel (%p300) target = $region48
        $region47: #{mymodel_forward.2} parent=39 // pred_region
          %vm303 = vcmask 523264
          %304 = vst.msk [vmem:[%s294] sm:$0xff] %vm303, 0.0
          %305 = vst.msk [vmem:[%s298] sm:$0xff] %vm303, 0.0
        $region48: #{mymodel_forward.2} parent=39 // pred_fallthru
          _
        %v306 = vld [vmem:[%s288] sm:$0xff]
        %v307 = vld [vmem:[#allocation2] sm:$0xff]
        %v308 = vld [vmem:[#allocation2 + $0x8] sm:$0xff]
        %v309 = vld [vmem:[#allocation2 + $0x10] sm:$0xff]
        %v310 = vld [vmem:[#allocation2 + $0x18] sm:$0xff]
        %v311 = vld [vmem:[%s2] sm:$0x1]
        %v313 = vlaneseq
        %v314 = vshrl.u32 %v313, 7
        %v315 = vsub.s32 0, %v314
        %v316 = vrot.slane %v311, %v315
        %vm318 = vcmask 261120
        %v320 = vsel %vm318, %v306, 0
        %322 = vmatprep.subr.mxu0 0.0
        %323 = vmatpush1.msra.mxu0 0.0
        %324 = vmatprep.subr.mxu0 0.0
        %325 = vmatpush1.msra.mxu0 0.0
        %326 = vmatprep.subr.mxu0 0.0
        %327 = vmatpush1.msra.mxu0 0.0
        %328 = vmatprep.subr.mxu0 0.0
        %329 = vmatpush1.msra.mxu0 0.0
        %330 = vmatprep.subr.mxu0 0.0
        %331 = vmatpush1.msra.mxu0 0.0
        %332 = vmatprep.subr.mxu0 0.0
        %333 = vmatpush1.msra.mxu0 0.0
        %334 = vmatprep.subr.mxu0 0.0
        %335 = vmatpush1.msra.mxu0 0.0
        %336 = vmatprep.subr.mxu0 0.0
        %337 = vmatpush1.msra.mxu0 0.0
        %338 = vmatprep.subr.mxu0 0.0
        %339 = vmatpush1.msra.mxu0 0.0
        %340 = vmatprep.subr.mxu0 0.0
        %341 = vmatpush1.msra.mxu0 0.0
        %342 = vmatprep.subr.mxu0 0.0
        %343 = vmatpush1.msra.mxu0 0.0
        %344 = vmatprep.subr.mxu0 0.0
        %345 = vmatpush1.msra.mxu0 0.0
        %346 = vmatprep.subr.mxu0 0.0
        %347 = vmatpush1.msra.mxu0 %v310
        %348 = vmatprep.subr.mxu0 0.0
        %349 = vmatpush1.msra.mxu0 %v309
        %350 = vmatprep.subr.mxu0 0.0
        %351 = vmatpush1.msra.mxu0 %v308
        %352 = vmatprep.subr.mxu0 0.0
        %353 = vmatpush1.msra.mxu0 %v307
        %354 = vmatprep.subr.mxu0 0.0
        %355 = vmatpush2.msra.mxu0 0.0
        %356 = vmatprep.subr.mxu0 0.0
        %357 = vmatpush2.msra.mxu0 0.0
        %358 = vmatprep.subr.mxu0 0.0
        %359 = vmatpush2.msra.mxu0 0.0
        %360 = vmatprep.subr.mxu0 0.0
        %361 = vmatpush2.msra.mxu0 0.0
        %362 = vmatprep.subr.mxu0 0.0
        %363 = vmatpush2.msra.mxu0 0.0
        %364 = vmatprep.subr.mxu0 0.0
        %365 = vmatpush2.msra.mxu0 0.0
        %366 = vmatprep.subr.mxu0 0.0
        %367 = vmatpush2.msra.mxu0 0.0
        %368 = vmatprep.subr.mxu0 0.0
        %369 = vmatpush2.msra.mxu0 0.0
        %370 = vmatprep.subr.mxu0 0.0
        %371 = vmatpush2.msra.mxu0 0.0
        %372 = vmatprep.subr.mxu0 0.0
        %373 = vmatpush2.msra.mxu0 0.0
        %374 = vmatprep.subr.mxu0 0.0
        %375 = vmatpush2.msra.mxu0 0.0
        %376 = vmatprep.subr.mxu0 0.0
        %377 = vmatpush2.msra.mxu0 0.0
        %378 = vmatprep.subr.mxu0 0.0
        %379 = vmatpush2.msra.mxu0 0.0
        %380 = vmatprep.subr.mxu0 0.0
        %381 = vmatpush2.msra.mxu0 0.0
        %382 = vmatprep.subr.mxu0 0.0
        %383 = vmatpush2.msra.mxu0 0.0
        %384 = vmatprep.subr.mxu0 0.0
        %385 = vmatpush2.msra.mxu0 0.0
        %386 = vmatprep.mubr.f32.mxu0 0.0
        %387 = vmatmul.mubr.f32.gmra.mxu0 %v320
        %v388 = vpop.f32.mrf.mxu0
        %v389 = vadd.f32 %v316, %v388
        %v390 = vpop.f32.mrf.mxu0
        %391 = vdwg.mxu0
        %v392 = vmax.f32 %v389, 0.0
        %v393 = vld [vmem:[%s3] sm:$0xff]
        %v394 = vld [vmem:[%s3 + $0x8] sm:$0xff]
        %v395 = vld [vmem:[%s3 + $0x10] sm:$0xff]
        %v396 = vld [vmem:[%s3 + $0x18] sm:$0xff]
        %v397 = vld [vmem:[%s3 + $0x20] sm:$0xff]
        %v398 = vld [vmem:[%s3 + $0x28] sm:$0xff]
        %v399 = vld [vmem:[%s3 + $0x30] sm:$0xff]
        %v400 = vld [vmem:[%s3 + $0x38] sm:$0xff]
        %v401 = vld [vmem:[%s4] sm:$0x1]
        %v403 = vlaneseq
        %v404 = vshrl.u32 %v403, 7
        %v405 = vsub.s32 0, %v404
        %v406 = vrot.slane %v401, %v405
        %vm408 = vcmask 523264
        %v410 = vsel %vm408, %v392, 0
        %412 = vmatprep.subr.mxu0 0.0
        %413 = vmatpush1.msra.mxu0 0.0
        %414 = vmatprep.subr.mxu0 0.0
        %415 = vmatpush1.msra.mxu0 0.0
        %416 = vmatprep.subr.mxu0 0.0
        %417 = vmatpush1.msra.mxu0 0.0
        %418 = vmatprep.subr.mxu0 0.0
        %419 = vmatpush1.msra.mxu0 0.0
        %420 = vmatprep.subr.mxu0 0.0
        %421 = vmatpush1.msra.mxu0 0.0
        %422 = vmatprep.subr.mxu0 0.0
        %423 = vmatpush1.msra.mxu0 0.0
        %424 = vmatprep.subr.mxu0 0.0
        %425 = vmatpush1.msra.mxu0 0.0
        %426 = vmatprep.subr.mxu0 0.0
        %427 = vmatpush1.msra.mxu0 0.0
        %428 = vmatprep.subr.mxu0 0.0
        %429 = vmatpush1.msra.mxu0 %v400
        %430 = vmatprep.subr.mxu0 0.0
        %431 = vmatpush1.msra.mxu0 %v399
        %432 = vmatprep.subr.mxu0 0.0
        %433 = vmatpush1.msra.mxu0 %v398
        %434 = vmatprep.subr.mxu0 0.0
        %435 = vmatpush1.msra.mxu0 %v397
        %436 = vmatprep.subr.mxu0 0.0
        %437 = vmatpush1.msra.mxu0 %v396
        %438 = vmatprep.subr.mxu0 0.0
        %439 = vmatpush1.msra.mxu0 %v395
        %440 = vmatprep.subr.mxu0 0.0
        %441 = vmatpush1.msra.mxu0 %v394
        %442 = vmatprep.subr.mxu0 0.0
        %443 = vmatpush1.msra.mxu0 %v393
        %444 = vmatprep.subr.mxu0 0.0
        %445 = vmatpush2.msra.mxu0 0.0
        %446 = vmatprep.subr.mxu0 0.0
        %447 = vmatpush2.msra.mxu0 0.0
        %448 = vmatprep.subr.mxu0 0.0
        %449 = vmatpush2.msra.mxu0 0.0
        %450 = vmatprep.subr.mxu0 0.0
        %451 = vmatpush2.msra.mxu0 0.0
        %452 = vmatprep.subr.mxu0 0.0
        %453 = vmatpush2.msra.mxu0 0.0
        %454 = vmatprep.subr.mxu0 0.0
        %455 = vmatpush2.msra.mxu0 0.0
        %456 = vmatprep.subr.mxu0 0.0
        %457 = vmatpush2.msra.mxu0 0.0
        %458 = vmatprep.subr.mxu0 0.0
        %459 = vmatpush2.msra.mxu0 0.0
        %460 = vmatprep.subr.mxu0 0.0
        %461 = vmatpush2.msra.mxu0 0.0
        %462 = vmatprep.subr.mxu0 0.0
        %463 = vmatpush2.msra.mxu0 0.0
        %464 = vmatprep.subr.mxu0 0.0
        %465 = vmatpush2.msra.mxu0 0.0
        %466 = vmatprep.subr.mxu0 0.0
        %467 = vmatpush2.msra.mxu0 0.0
        %468 = vmatprep.subr.mxu0 0.0
        %469 = vmatpush2.msra.mxu0 0.0
        %470 = vmatprep.subr.mxu0 0.0
        %471 = vmatpush2.msra.mxu0 0.0
        %472 = vmatprep.subr.mxu0 0.0
        %473 = vmatpush2.msra.mxu0 0.0
        %474 = vmatprep.subr.mxu0 0.0
        %475 = vmatpush2.msra.mxu0 0.0
        %476 = vmatprep.mubr.f32.mxu0 0.0
        %477 = vmatmul.mubr.f32.gmra.mxu0 %v410
        %v478 = vpop.f32.mrf.mxu0
        %v479 = vadd.f32 %v406, %v478
        %v480 = vpop.f32.mrf.mxu0
        %481 = vdwg.mxu0
        %v482 = vmax.f32 %v479, 0.0
        %s483 = smul.u32 %s23, 2
        %s484 = sadd.s32 %s483, %s24
        %s485 = smul.u32 %s484, 8
        %v486 = vlaneseq
        %v487 = vshrl.u32 %v486, 7
        %v488 = vstv %s485
        %v489 = vadd.s32 %v488, %v487
        %vm490 = vcmp.lt.s32.totalorder %v489, 20
        %v491 = vsel %vm490, 1, 0
        %vm492 = vcmp.eq.s32.totalorder %v491, 1
        %v493 = vsel %vm492, %v482, 0.0
        %v494 = vld [vmem:[%s294] sm:$0xff]
        %v495 = vsel %vm408, %v493, 0.0
        %v496 = vrot.slane %v495, 4
        %v497 = vadd.f32 %v495, %v496
        %v498 = vrot.slane %v497, 2
        %v499 = vadd.f32 %v497, %v498
        %v500 = vrot.slane %v499, 1
        %v501 = vadd.f32 %v499, %v500
        %v502 = vadd.f32 %v494, %v501
        %503 = vst.msk [vmem:[%s294] sm:$0xff] %vm408, %v502
        %v504 = vld [vmem:[%s298] sm:$0xff]
        %v505 = vmul.f32 %v493, %v493
        %v506 = vsel %vm408, %v505, 0.0
        %v507 = vrot.slane %v506, 4
        %v508 = vadd.f32 %v506, %v507
        %v509 = vrot.slane %v508, 2
        %v510 = vadd.f32 %v508, %v509
        %v511 = vrot.slane %v510, 1
        %v512 = vadd.f32 %v510, %v511
        %v513 = vadd.f32 %v504, %v512
        %514 = vst.msk [vmem:[%s298] sm:$0xff] %vm408, %v513
        %p515 = scmp.lt.s32.totalorder %s23, 1
        %s516 = scalar_select %p515, %s23, 1
        %s517 = smul.addr %s516, 8
        %s518 = scalar_lea.vmem %s5, %s517
        %p519 = scmp.lt.s32.totalorder %s23, 1
        %s520 = scalar_select %p519, %s23, 1
        %s521 = smul.addr %s520, 8
        %s522 = scalar_lea.vmem %s6, %s521
        // Predicated region
        $region49: #{mymodel_forward.2} parent=39 // pred_check
          %p523 = pneg %p163
        $region50: #{mymodel_forward.2} parent=39 // pred_check_branch
          %525 = sbr.rel (%p523) target = $region52
        $region51: #{mymodel_forward.2} parent=39 // pred_region
          _
        $region52: #{mymodel_forward.2} parent=39 // pred_fallthru
          _
        // Predicated region
        $region53: #{mymodel_forward.2} parent=39 // pred_check
          %p526 = pneg %p189
        $region54: #{mymodel_forward.2} parent=39 // pred_check_branch
          %528 = sbr.rel (%p526) target = $region56
        $region55: #{mymodel_forward.2} parent=39 // pred_region
          _
        $region56: #{mymodel_forward.2} parent=39 // pred_fallthru
          _
      $region40: #{mymodel_forward.2} parent=5 // pred_fallthru
        _
      %p529 = scmp.le.s32.totalorder 2, %s14
      // Predicated region
      $region57: #{mymodel_forward.2} parent=5 // pred_check
        %p530 = pneg %p529
      $region58: #{mymodel_forward.2} parent=5 // pred_check_branch
        %532 = sbr.rel (%p530) target = $region60
      $region59: #{mymodel_forward.2} parent=5 // pred_region
        %s533 = ssub.s32 %s14, 2
        // Predicated region
        $region61: #{mymodel_forward.2} parent=59 // pred_check
          %p534 = pneg %p169
        $region62: #{mymodel_forward.2} parent=59 // pred_check_branch
          %536 = sbr.rel (%p534) target = $region64
        $region63: #{mymodel_forward.2} parent=59 // pred_region
          %p537 = scmp.lt.s32.totalorder %s25, 1
          %s538 = scalar_select %p537, %s25, 1
          %s539 = smul.addr %s538, 8
          %s540 = scalar_lea.vmem %s5, %s539
        $region64: #{mymodel_forward.2} parent=59 // pred_fallthru
          _
        // Predicated region
        $region65: #{mymodel_forward.2} parent=59 // pred_check
          %p541 = pneg %p195
        $region66: #{mymodel_forward.2} parent=59 // pred_check_branch
          %543 = sbr.rel (%p541) target = $region68
        $region67: #{mymodel_forward.2} parent=59 // pred_region
          %p544 = scmp.lt.s32.totalorder %s25, 1
          %s545 = scalar_select %p544, %s25, 1
          %s546 = smul.addr %s545, 8
          %s547 = scalar_lea.vmem %s6, %s546
        $region68: #{mymodel_forward.2} parent=59 // pred_fallthru
          _
      $region60: #{mymodel_forward.2} parent=5 // pred_fallthru
        _
    $region6: #{mymodel_forward.2} parent=1 // loop_footer
      %s18 = sadd.s32 1, %s14
    $region7: #{mymodel_forward.2} parent=1 // loop_footer_branch
      %13 = sbr.rel target = $region3
    $region8: #{mymodel_forward.2} parent=1 // loop_exit
      _
    %548 = vsyncpa [#allocation3], 1
    %s549 = scalar_lea.sflag [#allocation3], 1
    %550 = vsyncpa %s549, 1

// kernel: mymodel_forward.3
$region0: #{mymodel_forward.3}
  #allocation0 [shape = 'u32[]', space=smem, size = 0x4, offset = 0x4, fixed_abs, tag = 'smem constant byte address 0x4 - core index']
  #allocation1 [shape = 'u32[144,128]{1,0:T(1,128)}', space=vmem, size = 0x12000, scoped, tag = 'internal scratch']
  %s0 = inlined_call_operand.vmem [shape: f32[32,32], index: 0, kind: input, shape index: {}]
  %s1 = inlined_call_operand.vmem [shape: f32[32,64], index: 1, kind: input, shape index: {}]
  %s2 = inlined_call_operand.vmem [shape: f32[1,64], index: 2, kind: input, shape index: {}]
  %s3 = inlined_call_operand.vmem [shape: f32[64,64], index: 3, kind: input, shape index: {}]
  %s4 = inlined_call_operand.vmem [shape: f32[1,64], index: 4, kind: input, shape index: {}]
  %s5 = inlined_call_operand.vmem [shape: f32[64,128], index: 5, kind: input, shape index: {}]
  %s6 = inlined_call_operand.vmem [shape: f32[1,128], index: 6, kind: input, shape index: {}]
  %s7 = inlined_call_operand.vmem [shape: f32[128,256], index: 7, kind: input, shape index: {}]
  %s8 = inlined_call_operand.vmem [shape: f32[1,256], index: 8, kind: input, shape index: {}]
  %s9 = inlined_call_operand.vmem [shape: f32[256,32], index: 9, kind: input, shape index: {}]
  %s10 = inlined_call_operand.vmem [shape: f32[1,32], index: 10, kind: input, shape index: {}]
  %s11 = inlined_call_operand.vmem [shape: f32[32,6], index: 11, kind: input, shape index: {}]
  %s12 = inlined_call_operand.vmem [shape: f32[1,6], index: 12, kind: input, shape index: {}]
  %s13 = inlined_call_operand.vmem [shape: f32[32,6], index: 13, kind: output, shape index: {}]
  %s14 = sld [smem:[#allocation0]]
  $region85: #{mymodel_forward.3} parent=0
    _
  %s16 = ssub.s32 1, %s14
  %s17 = scalar_select 0, %s16, %s14
  loop: start=0, step=1, limit=6
  $region2: #{mymodel_forward.3} parent=0 // loop_pre_header
    _
  $region3: #{mymodel_forward.3} parent=0 // loop_header
    %s19 = sphi 0, %s23
    %p20 = scmp.ge.s32.totalorder %s19, 6
    %s29 = sphi 0, %s31
    %s32 = sphi 0, %s29
    %s33 = sphi 0, %s32
    %s49 = sphi 0, %s33
    %s53 = sphi 0, %s53
    %s55 = sphi 0, %s53
    %s56 = sphi 0, %s55
    %s70 = sphi 0, %s56
    %s74 = sphi 0, %s74
    %s76 = sphi 0, %s74
    %s77 = sphi 0, %s76
    %s91 = sphi 0, %s77
    %s95 = sphi 0, %s95
    %s97 = sphi 0, %s95
    %s98 = sphi 0, %s97
    %s112 = sphi 0, %s98
    %s116 = sphi 0, %s116
    %s118 = sphi 0, %s116
    %s119 = sphi 0, %s118
    %s133 = sphi 0, %s119
    %s137 = sphi 0, %s137
    %s139 = sphi 0, %s137
    %s140 = sphi 0, %s139
    %s154 = sphi 0, %s140
    %s158 = sphi 0, %s158
    %s160 = sphi 0, %s158
    %s161 = sphi 0, %s160
    %s175 = sphi 0, %s161
    %s179 = sphi 0, %s179
    %s181 = sphi 0, %s179
    %s182 = sphi 0, %s181
    %s196 = sphi 0, %s182
    %s200 = sphi 0, %s200
    %s202 = sphi 0, %s200
    %s203 = sphi 0, %s202
    %s217 = sphi 0, %s203
    %s221 = sphi 0, %s221
    %s223 = sphi 0, %s221
    %s224 = sphi 0, %s223
    %s238 = sphi 0, %s224
    %s242 = sphi 0, %s242
    %s244 = sphi 0, %s242
    %s245 = sphi 0, %s244
    %s259 = sphi 0, %s245
    %s263 = sphi 0, %s263
    %s265 = sphi 0, %s263
    %s266 = sphi 0, %s265
    %s280 = sphi 0, %s266
    %s284 = sphi 0, %s284
    %s286 = sphi 0, %s284
    %s287 = sphi 0, %s286
    %s301 = sphi 0, %s287
    %s307 = sphi 0, %s309
    %s310 = sphi 0, %s307
    %s311 = sphi 0, %s310
    %s327 = sphi 0, %s311
  $region4: #{mymodel_forward.3} parent=0 // loop_header_branch
    %22 = sbr.rel (%p20) target = $region8
  $region5: #{mymodel_forward.3} parent=0 // loop_body
    %s24 = ssub.s32 %s19, 1
    %s25 = ssub.s32 %s19, 2
    %s26 = sadd.s32 %s19, 1
    %s27 = ssub.s32 %s19, %s26
    %p28 = scmp.eq.s32.totalorder %s27, 0
    %s30 = sadd.s32 %s29, 1
    %s31 = scalar_select %p28, %s29, %s30
    %p34 = pneg %p28
    %p35 = scmp.eq.s32.totalorder %s19, 3
    %p36 = por %p34, %p35
    %p37 = scmp.ne.s32.totalorder %s29, %s32
    %p38 = scmp.eq.s32.totalorder %s19, 0
    %p39 = por %p37, %p38
    %p40 = scmp.ne.s32.totalorder %s29, %s32
    %p41 = scmp.eq.s32.totalorder %s24, 3
    %p42 = por %p40, %p41
    %p43 = scmp.ne.s32.totalorder %s32, %s33
    %p44 = scmp.eq.s32.totalorder %s24, 0
    %p45 = por %p43, %p44
    %p46 = scmp.ne.s32.totalorder %s32, %s33
    %p47 = scmp.eq.s32.totalorder %s25, 3
    %p48 = por %p46, %p47
    %p50 = scmp.ne.s32.totalorder %s33, %s49
    %p51 = scmp.eq.s32.totalorder %s25, 0
    %p52 = por %p50, %p51
    %s54 = sadd.s32 %s53, 1
    %p57 = scmp.eq.s32.totalorder %s19, 3
    %p58 = scmp.ne.s32.totalorder %s53, %s55
    %p59 = scmp.eq.s32.totalorder %s19, 0
    %p60 = por %p58, %p59
    %p61 = scmp.ne.s32.totalorder %s53, %s55
    %p62 = scmp.eq.s32.totalorder %s24, 3
    %p63 = por %p61, %p62
    %p64 = scmp.ne.s32.totalorder %s55, %s56
    %p65 = scmp.eq.s32.totalorder %s24, 0
    %p66 = por %p64, %p65
    %p67 = scmp.ne.s32.totalorder %s55, %s56
    %p68 = scmp.eq.s32.totalorder %s25, 3
    %p69 = por %p67, %p68
    %p71 = scmp.ne.s32.totalorder %s56, %s70
    %p72 = scmp.eq.s32.totalorder %s25, 0
    %p73 = por %p71, %p72
    %s75 = sadd.s32 %s74, 1
    %p78 = scmp.eq.s32.totalorder %s19, 3
    %p79 = scmp.ne.s32.totalorder %s74, %s76
    %p80 = scmp.eq.s32.totalorder %s19, 0
    %p81 = por %p79, %p80
    %p82 = scmp.ne.s32.totalorder %s74, %s76
    %p83 = scmp.eq.s32.totalorder %s24, 3
    %p84 = por %p82, %p83
    %p85 = scmp.ne.s32.totalorder %s76, %s77
    %p86 = scmp.eq.s32.totalorder %s24, 0
    %p87 = por %p85, %p86
    %p88 = scmp.ne.s32.totalorder %s76, %s77
    %p89 = scmp.eq.s32.totalorder %s25, 3
    %p90 = por %p88, %p89
    %p92 = scmp.ne.s32.totalorder %s77, %s91
    %p93 = scmp.eq.s32.totalorder %s25, 0
    %p94 = por %p92, %p93
    %s96 = sadd.s32 %s95, 1
    %p99 = scmp.eq.s32.totalorder %s19, 3
    %p100 = scmp.ne.s32.totalorder %s95, %s97
    %p101 = scmp.eq.s32.totalorder %s19, 0
    %p102 = por %p100, %p101
    %p103 = scmp.ne.s32.totalorder %s95, %s97
    %p104 = scmp.eq.s32.totalorder %s24, 3
    %p105 = por %p103, %p104
    %p106 = scmp.ne.s32.totalorder %s97, %s98
    %p107 = scmp.eq.s32.totalorder %s24, 0
    %p108 = por %p106, %p107
    %p109 = scmp.ne.s32.totalorder %s97, %s98
    %p110 = scmp.eq.s32.totalorder %s25, 3
    %p111 = por %p109, %p110
    %p113 = scmp.ne.s32.totalorder %s98, %s112
    %p114 = scmp.eq.s32.totalorder %s25, 0
    %p115 = por %p113, %p114
    %s117 = sadd.s32 %s116, 1
    %p120 = scmp.eq.s32.totalorder %s19, 3
    %p121 = scmp.ne.s32.totalorder %s116, %s118
    %p122 = scmp.eq.s32.totalorder %s19, 0
    %p123 = por %p121, %p122
    %p124 = scmp.ne.s32.totalorder %s116, %s118
    %p125 = scmp.eq.s32.totalorder %s24, 3
    %p126 = por %p124, %p125
    %p127 = scmp.ne.s32.totalorder %s118, %s119
    %p128 = scmp.eq.s32.totalorder %s24, 0
    %p129 = por %p127, %p128
    %p130 = scmp.ne.s32.totalorder %s118, %s119
    %p131 = scmp.eq.s32.totalorder %s25, 3
    %p132 = por %p130, %p131
    %p134 = scmp.ne.s32.totalorder %s119, %s133
    %p135 = scmp.eq.s32.totalorder %s25, 0
    %p136 = por %p134, %p135
    %s138 = sadd.s32 %s137, 1
    %p141 = scmp.eq.s32.totalorder %s19, 3
    %p142 = scmp.ne.s32.totalorder %s137, %s139
    %p143 = scmp.eq.s32.totalorder %s19, 0
    %p144 = por %p142, %p143
    %p145 = scmp.ne.s32.totalorder %s137, %s139
    %p146 = scmp.eq.s32.totalorder %s24, 3
    %p147 = por %p145, %p146
    %p148 = scmp.ne.s32.totalorder %s139, %s140
    %p149 = scmp.eq.s32.totalorder %s24, 0
    %p150 = por %p148, %p149
    %p151 = scmp.ne.s32.totalorder %s139, %s140
    %p152 = scmp.eq.s32.totalorder %s25, 3
    %p153 = por %p151, %p152
    %p155 = scmp.ne.s32.totalorder %s140, %s154
    %p156 = scmp.eq.s32.totalorder %s25, 0
    %p157 = por %p155, %p156
    %s159 = sadd.s32 %s158, 1
    %p162 = scmp.eq.s32.totalorder %s19, 3
    %p163 = scmp.ne.s32.totalorder %s158, %s160
    %p164 = scmp.eq.s32.totalorder %s19, 0
    %p165 = por %p163, %p164
    %p166 = scmp.ne.s32.totalorder %s158, %s160
    %p167 = scmp.eq.s32.totalorder %s24, 3
    %p168 = por %p166, %p167
    %p169 = scmp.ne.s32.totalorder %s160, %s161
    %p170 = scmp.eq.s32.totalorder %s24, 0
    %p171 = por %p169, %p170
    %p172 = scmp.ne.s32.totalorder %s160, %s161
    %p173 = scmp.eq.s32.totalorder %s25, 3
    %p174 = por %p172, %p173
    %p176 = scmp.ne.s32.totalorder %s161, %s175
    %p177 = scmp.eq.s32.totalorder %s25, 0
    %p178 = por %p176, %p177
    %s180 = sadd.s32 %s179, 1
    %p183 = scmp.eq.s32.totalorder %s19, 3
    %p184 = scmp.ne.s32.totalorder %s179, %s181
    %p185 = scmp.eq.s32.totalorder %s19, 0
    %p186 = por %p184, %p185
    %p187 = scmp.ne.s32.totalorder %s179, %s181
    %p188 = scmp.eq.s32.totalorder %s24, 3
    %p189 = por %p187, %p188
    %p190 = scmp.ne.s32.totalorder %s181, %s182
    %p191 = scmp.eq.s32.totalorder %s24, 0
    %p192 = por %p190, %p191
    %p193 = scmp.ne.s32.totalorder %s181, %s182
    %p194 = scmp.eq.s32.totalorder %s25, 3
    %p195 = por %p193, %p194
    %p197 = scmp.ne.s32.totalorder %s182, %s196
    %p198 = scmp.eq.s32.totalorder %s25, 0
    %p199 = por %p197, %p198
    %s201 = sadd.s32 %s200, 1
    %p204 = scmp.eq.s32.totalorder %s19, 3
    %p205 = scmp.ne.s32.totalorder %s200, %s202
    %p206 = scmp.eq.s32.totalorder %s19, 0
    %p207 = por %p205, %p206
    %p208 = scmp.ne.s32.totalorder %s200, %s202
    %p209 = scmp.eq.s32.totalorder %s24, 3
    %p210 = por %p208, %p209
    %p211 = scmp.ne.s32.totalorder %s202, %s203
    %p212 = scmp.eq.s32.totalorder %s24, 0
    %p213 = por %p211, %p212
    %p214 = scmp.ne.s32.totalorder %s202, %s203
    %p215 = scmp.eq.s32.totalorder %s25, 3
    %p216 = por %p214, %p215
    %p218 = scmp.ne.s32.totalorder %s203, %s217
    %p219 = scmp.eq.s32.totalorder %s25, 0
    %p220 = por %p218, %p219
    %s222 = sadd.s32 %s221, 1
    %p225 = scmp.eq.s32.totalorder %s19, 3
    %p226 = scmp.ne.s32.totalorder %s221, %s223
    %p227 = scmp.eq.s32.totalorder %s19, 0
    %p228 = por %p226, %p227
    %p229 = scmp.ne.s32.totalorder %s221, %s223
    %p230 = scmp.eq.s32.totalorder %s24, 3
    %p231 = por %p229, %p230
    %p232 = scmp.ne.s32.totalorder %s223, %s224
    %p233 = scmp.eq.s32.totalorder %s24, 0
    %p234 = por %p232, %p233
    %p235 = scmp.ne.s32.totalorder %s223, %s224
    %p236 = scmp.eq.s32.totalorder %s25, 3
    %p237 = por %p235, %p236
    %p239 = scmp.ne.s32.totalorder %s224, %s238
    %p240 = scmp.eq.s32.totalorder %s25, 0
    %p241 = por %p239, %p240
    %s243 = sadd.s32 %s242, 1
    %p246 = scmp.eq.s32.totalorder %s19, 3
    %p247 = scmp.ne.s32.totalorder %s242, %s244
    %p248 = scmp.eq.s32.totalorder %s19, 0
    %p249 = por %p247, %p248
    %p250 = scmp.ne.s32.totalorder %s242, %s244
    %p251 = scmp.eq.s32.totalorder %s24, 3
    %p252 = por %p250, %p251
    %p253 = scmp.ne.s32.totalorder %s244, %s245
    %p254 = scmp.eq.s32.totalorder %s24, 0
    %p255 = por %p253, %p254
    %p256 = scmp.ne.s32.totalorder %s244, %s245
    %p257 = scmp.eq.s32.totalorder %s25, 3
    %p258 = por %p256, %p257
    %p260 = scmp.ne.s32.totalorder %s245, %s259
    %p261 = scmp.eq.s32.totalorder %s25, 0
    %p262 = por %p260, %p261
    %s264 = sadd.s32 %s263, 1
    %p267 = scmp.eq.s32.totalorder %s19, 3
    %p268 = scmp.ne.s32.totalorder %s263, %s265
    %p269 = scmp.eq.s32.totalorder %s19, 0
    %p270 = por %p268, %p269
    %p271 = scmp.ne.s32.totalorder %s263, %s265
    %p272 = scmp.eq.s32.totalorder %s24, 3
    %p273 = por %p271, %p272
    %p274 = scmp.ne.s32.totalorder %s265, %s266
    %p275 = scmp.eq.s32.totalorder %s24, 0
    %p276 = por %p274, %p275
    %p277 = scmp.ne.s32.totalorder %s265, %s266
    %p278 = scmp.eq.s32.totalorder %s25, 3
    %p279 = por %p277, %p278
    %p281 = scmp.ne.s32.totalorder %s266, %s280
    %p282 = scmp.eq.s32.totalorder %s25, 0
    %p283 = por %p281, %p282
    %s285 = sadd.s32 %s284, 1
    %p288 = scmp.eq.s32.totalorder %s19, 3
    %p289 = scmp.ne.s32.totalorder %s284, %s286
    %p290 = scmp.eq.s32.totalorder %s19, 0
    %p291 = por %p289, %p290
    %p292 = scmp.ne.s32.totalorder %s284, %s286
    %p293 = scmp.eq.s32.totalorder %s24, 3
    %p294 = por %p292, %p293
    %p295 = scmp.ne.s32.totalorder %s286, %s287
    %p296 = scmp.eq.s32.totalorder %s24, 0
    %p297 = por %p295, %p296
    %p298 = scmp.ne.s32.totalorder %s286, %s287
    %p299 = scmp.eq.s32.totalorder %s25, 3
    %p300 = por %p298, %p299
    %p302 = scmp.ne.s32.totalorder %s287, %s301
    %p303 = scmp.eq.s32.totalorder %s25, 0
    %p304 = por %p302, %p303
    %s305 = ssub.s32 %s19, %s26
    %p306 = scmp.eq.s32.totalorder %s305, 0
    %s308 = sadd.s32 %s307, 1
    %s309 = scalar_select %p306, %s307, %s308
    %p312 = pneg %p306
    %p313 = scmp.eq.s32.totalorder %s19, 3
    %p314 = por %p312, %p313
    %p315 = scmp.ne.s32.totalorder %s307, %s310
    %p316 = scmp.eq.s32.totalorder %s19, 0
    %p317 = por %p315, %p316
    %p318 = scmp.ne.s32.totalorder %s307, %s310
    %p319 = scmp.eq.s32.totalorder %s24, 3
    %p320 = por %p318, %p319
    %p321 = scmp.ne.s32.totalorder %s310, %s311
    %p322 = scmp.eq.s32.totalorder %s24, 0
    %p323 = por %p321, %p322
    %p324 = scmp.ne.s32.totalorder %s310, %s311
    %p325 = scmp.eq.s32.totalorder %s25, 3
    %p326 = por %p324, %p325
    %p328 = scmp.ne.s32.totalorder %s311, %s327
    %p329 = scmp.eq.s32.totalorder %s25, 0
    %p330 = por %p328, %p329
    %p331 = scmp.le.s32.totalorder 1, %s19
    %p332 = scmp.lt.s32.totalorder %s19, 5
    %p333 = pnand %p331, %p332
    %p334 = pneg %p333
    // Predicated region
    $region9: #{mymodel_forward.3} parent=5 // pred_check
      _
    $region10: #{mymodel_forward.3} parent=5 // pred_check_branch
      %336 = sbr.rel (%p333) target = $region12
    $region11: #{mymodel_forward.3} parent=5 // pred_region
      %s337 = ssub.s32 %s19, 1
      // Predicated region
      $region13: #{mymodel_forward.3} parent=11 // pred_check
        %p338 = pneg %p66
      $region14: #{mymodel_forward.3} parent=11 // pred_check_branch
        %340 = sbr.rel (%p338) target = $region16
      $region15: #{mymodel_forward.3} parent=11 // pred_region
        _
      $region16: #{mymodel_forward.3} parent=11 // pred_fallthru
        _
      // Predicated region
      $region17: #{mymodel_forward.3} parent=11 // pred_check
        %p341 = pneg %p87
      $region18: #{mymodel_forward.3} parent=11 // pred_check_branch
        %343 = sbr.rel (%p341) target = $region20
      $region19: #{mymodel_forward.3} parent=11 // pred_region
        _
      $region20: #{mymodel_forward.3} parent=11 // pred_fallthru
        _
      // Predicated region
      $region21: #{mymodel_forward.3} parent=11 // pred_check
        %p344 = pneg %p108
      $region22: #{mymodel_forward.3} parent=11 // pred_check_branch
        %346 = sbr.rel (%p344) target = $region24
      $region23: #{mymodel_forward.3} parent=11 // pred_region
        _
      $region24: #{mymodel_forward.3} parent=11 // pred_fallthru
        _
      // Predicated region
      $region25: #{mymodel_forward.3} parent=11 // pred_check
        %p347 = pneg %p129
      $region26: #{mymodel_forward.3} parent=11 // pred_check_branch
        %349 = sbr.rel (%p347) target = $region28
      $region27: #{mymodel_forward.3} parent=11 // pred_region
        _
      $region28: #{mymodel_forward.3} parent=11 // pred_fallthru
        _
      // Predicated region
      $region29: #{mymodel_forward.3} parent=11 // pred_check
        %p350 = pneg %p150
      $region30: #{mymodel_forward.3} parent=11 // pred_check_branch
        %352 = sbr.rel (%p350) target = $region32
      $region31: #{mymodel_forward.3} parent=11 // pred_region
        _
      $region32: #{mymodel_forward.3} parent=11 // pred_fallthru
        _
      // Predicated region
      $region33: #{mymodel_forward.3} parent=11 // pred_check
        %p353 = pneg %p171
      $region34: #{mymodel_forward.3} parent=11 // pred_check_branch
        %355 = sbr.rel (%p353) target = $region36
      $region35: #{mymodel_forward.3} parent=11 // pred_region
        _
      $region36: #{mymodel_forward.3} parent=11 // pred_fallthru
        _
      // Predicated region
      $region37: #{mymodel_forward.3} parent=11 // pred_check
        %p356 = pneg %p192
      $region38: #{mymodel_forward.3} parent=11 // pred_check_branch
        %358 = sbr.rel (%p356) target = $region40
      $region39: #{mymodel_forward.3} parent=11 // pred_region
        _
      $region40: #{mymodel_forward.3} parent=11 // pred_fallthru
        _
      // Predicated region
      $region41: #{mymodel_forward.3} parent=11 // pred_check
        %p359 = pneg %p213
      $region42: #{mymodel_forward.3} parent=11 // pred_check_branch
        %361 = sbr.rel (%p359) target = $region44
      $region43: #{mymodel_forward.3} parent=11 // pred_region
        _
      $region44: #{mymodel_forward.3} parent=11 // pred_fallthru
        _
      // Predicated region
      $region45: #{mymodel_forward.3} parent=11 // pred_check
        %p362 = pneg %p234
      $region46: #{mymodel_forward.3} parent=11 // pred_check_branch
        %364 = sbr.rel (%p362) target = $region48
      $region47: #{mymodel_forward.3} parent=11 // pred_region
        _
      $region48: #{mymodel_forward.3} parent=11 // pred_fallthru
        _
      // Predicated region
      $region49: #{mymodel_forward.3} parent=11 // pred_check
        %p365 = pneg %p255
      $region50: #{mymodel_forward.3} parent=11 // pred_check_branch
        %367 = sbr.rel (%p365) target = $region52
      $region51: #{mymodel_forward.3} parent=11 // pred_region
        _
      $region52: #{mymodel_forward.3} parent=11 // pred_fallthru
        _
      // Predicated region
      $region53: #{mymodel_forward.3} parent=11 // pred_check
        %p368 = pneg %p276
      $region54: #{mymodel_forward.3} parent=11 // pred_check_branch
        %370 = sbr.rel (%p368) target = $region56
      $region55: #{mymodel_forward.3} parent=11 // pred_region
        _
      $region56: #{mymodel_forward.3} parent=11 // pred_fallthru
        _
      // Predicated region
      $region57: #{mymodel_forward.3} parent=11 // pred_check
        %p371 = pneg %p297
      $region58: #{mymodel_forward.3} parent=11 // pred_check_branch
        %373 = sbr.rel (%p371) target = $region60
      $region59: #{mymodel_forward.3} parent=11 // pred_region
        _
      $region60: #{mymodel_forward.3} parent=11 // pred_fallthru
        _
    $region12: #{mymodel_forward.3} parent=5 // pred_fallthru
      _
    %p374 = scmp.lt.s32.totalorder %s19, 4
    // Predicated region
    $region61: #{mymodel_forward.3} parent=5 // pred_check
      %p375 = pneg %p374
    $region62: #{mymodel_forward.3} parent=5 // pred_check_branch
      %377 = sbr.rel (%p375) target = $region64
    $region63: #{mymodel_forward.3} parent=5 // pred_region
      // Predicated region
      $region65: #{mymodel_forward.3} parent=63 // pred_check
        %p378 = pneg %p39
      $region66: #{mymodel_forward.3} parent=63 // pred_check_branch
        %380 = sbr.rel (%p378) target = $region68
      $region67: #{mymodel_forward.3} parent=63 // pred_region
        %p381 = scmp.lt.s32.totalorder %s19, 3
        %s382 = scalar_select %p381, %s19, 3
        %s383 = smul.addr %s382, 8
        %s384 = scalar_lea.vmem %s0, %s383
      $region68: #{mymodel_forward.3} parent=63 // pred_fallthru
        _
    $region64: #{mymodel_forward.3} parent=5 // pred_fallthru
      _
    %p385 = scmp.le.s32.totalorder 1, %s19
    %p386 = scmp.lt.s32.totalorder %s19, 5
    %p387 = pnand %p385, %p386
    %p388 = pneg %p387
    // Predicated region
    $region69: #{mymodel_forward.3} parent=5 // pred_check
      _
    $region70: #{mymodel_forward.3} parent=5 // pred_check_branch
      %390 = sbr.rel (%p387) target = $region72
    $region71: #{mymodel_forward.3} parent=5 // pred_region
      %s391 = ssub.s32 %s19, 1
      %p392 = scmp.lt.s32.totalorder %s24, 3
      %s393 = scalar_select %p392, %s24, 3
      %s394 = smul.addr %s393, 8
      %s395 = scalar_lea.vmem %s0, %s394
      %p396 = pneg %p45
      %p397 = pneg %p42
      %p398 = pneg %p66
      %p399 = pneg %p63
      %p400 = pneg %p87
      %p401 = pneg %p84
      %p402 = pneg %p108
      %p403 = pneg %p105
      %p404 = pneg %p129
      %p405 = pneg %p126
      %p406 = pneg %p150
      %p407 = pneg %p147
      %p408 = pneg %p171
      %p409 = pneg %p168
      %p410 = pneg %p192
      %p411 = pneg %p189
      %p412 = pneg %p213
      %p413 = pneg %p210
      %p414 = pneg %p234
      %p415 = pneg %p231
      %p416 = pneg %p255
      %p417 = pneg %p252
      %p418 = pneg %p276
      %p419 = pneg %p273
      %p420 = pneg %p297
      %p421 = pneg %p294
      %p422 = pneg %p323
      %p423 = pneg %p320
      %p424 = scmp.lt.s32.totalorder %s24, 3
      %s425 = scalar_select %p424, %s24, 3
      %s426 = smul.addr %s425, 8
      %s427 = scalar_lea.vmem %s13, %s426
      %p428 = scmp.lt.s32.totalorder %s24, 3
      %s429 = scalar_select %p428, %s24, 3
      %s430 = smul.addr %s429, 8
      %s431 = scalar_lea.vmem %s0, %s430
      %p432 = scmp.lt.s32.totalorder %s24, 3
      %s433 = scalar_select %p432, %s24, 3
      %s434 = smul.addr %s433, 8
      %s435 = scalar_lea.vmem %s13, %s434
      %v436 = vld [vmem:[%s431] sm:$0xff]
      %v437 = vld [vmem:[%s1] sm:$0xff]
      %v438 = vld [vmem:[%s1 + $0x8] sm:$0xff]
      %v439 = vld [vmem:[%s1 + $0x10] sm:$0xff]
      %v440 = vld [vmem:[%s1 + $0x18] sm:$0xff]
      %v441 = vld [vmem:[%s2] sm:$0x1]
      %v443 = vlaneseq
      %v444 = vshrl.u32 %v443, 7
      %v445 = vsub.s32 0, %v444
      %v446 = vrot.slane %v441, %v445
      %vm448 = vcmask 261120
      %v450 = vsel %vm448, %v436, 0
      %452 = vmatprep.subr.mxu0 0.0
      %453 = vmatpush1.msra.mxu0 0.0
      %454 = vmatprep.subr.mxu0 0.0
      %455 = vmatpush1.msra.mxu0 0.0
      %456 = vmatprep.subr.mxu0 0.0
      %457 = vmatpush1.msra.mxu0 0.0
      %458 = vmatprep.subr.mxu0 0.0
      %459 = vmatpush1.msra.mxu0 0.0
      %460 = vmatprep.subr.mxu0 0.0
      %461 = vmatpush1.msra.mxu0 0.0
      %462 = vmatprep.subr.mxu0 0.0
      %463 = vmatpush1.msra.mxu0 0.0
      %464 = vmatprep.subr.mxu0 0.0
      %465 = vmatpush1.msra.mxu0 0.0
      %466 = vmatprep.subr.mxu0 0.0
      %467 = vmatpush1.msra.mxu0 0.0
      %468 = vmatprep.subr.mxu0 0.0
      %469 = vmatpush1.msra.mxu0 0.0
      %470 = vmatprep.subr.mxu0 0.0
      %471 = vmatpush1.msra.mxu0 0.0
      %472 = vmatprep.subr.mxu0 0.0
      %473 = vmatpush1.msra.mxu0 0.0
      %474 = vmatprep.subr.mxu0 0.0
      %475 = vmatpush1.msra.mxu0 0.0
      %476 = vmatprep.subr.mxu0 0.0
      %477 = vmatpush1.msra.mxu0 %v440
      %478 = vmatprep.subr.mxu0 0.0
      %479 = vmatpush1.msra.mxu0 %v439
      %480 = vmatprep.subr.mxu0 0.0
      %481 = vmatpush1.msra.mxu0 %v438
      %482 = vmatprep.subr.mxu0 0.0
      %483 = vmatpush1.msra.mxu0 %v437
      %484 = vmatprep.subr.mxu0 0.0
      %485 = vmatpush2.msra.mxu0 0.0
      %486 = vmatprep.subr.mxu0 0.0
      %487 = vmatpush2.msra.mxu0 0.0
      %488 = vmatprep.subr.mxu0 0.0
      %489 = vmatpush2.msra.mxu0 0.0
      %490 = vmatprep.subr.mxu0 0.0
      %491 = vmatpush2.msra.mxu0 0.0
      %492 = vmatprep.subr.mxu0 0.0
      %493 = vmatpush2.msra.mxu0 0.0
      %494 = vmatprep.subr.mxu0 0.0
      %495 = vmatpush2.msra.mxu0 0.0
      %496 = vmatprep.subr.mxu0 0.0
      %497 = vmatpush2.msra.mxu0 0.0
      %498 = vmatprep.subr.mxu0 0.0
      %499 = vmatpush2.msra.mxu0 0.0
      %500 = vmatprep.subr.mxu0 0.0
      %501 = vmatpush2.msra.mxu0 0.0
      %502 = vmatprep.subr.mxu0 0.0
      %503 = vmatpush2.msra.mxu0 0.0
      %504 = vmatprep.subr.mxu0 0.0
      %505 = vmatpush2.msra.mxu0 0.0
      %506 = vmatprep.subr.mxu0 0.0
      %507 = vmatpush2.msra.mxu0 0.0
      %508 = vmatprep.subr.mxu0 0.0
      %509 = vmatpush2.msra.mxu0 0.0
      %510 = vmatprep.subr.mxu0 0.0
      %511 = vmatpush2.msra.mxu0 0.0
      %512 = vmatprep.subr.mxu0 0.0
      %513 = vmatpush2.msra.mxu0 0.0
      %514 = vmatprep.subr.mxu0 0.0
      %515 = vmatpush2.msra.mxu0 0.0
      %516 = vmatprep.mubr.f32.mxu0 0.0
      %517 = vmatmul.mubr.f32.gmra.mxu0 %v450
      %v518 = vpop.f32.mrf.mxu0
      %v519 = vadd.f32 %v446, %v518
      %v520 = vpop.f32.mrf.mxu0
      %521 = vdwg.mxu0
      %v522 = vmax.f32 %v519, 0.0
      %v523 = vld [vmem:[%s3] sm:$0xff]
      %v524 = vld [vmem:[%s3 + $0x8] sm:$0xff]
      %v525 = vld [vmem:[%s3 + $0x10] sm:$0xff]
      %v526 = vld [vmem:[%s3 + $0x18] sm:$0xff]
      %v527 = vld [vmem:[%s3 + $0x20] sm:$0xff]
      %v528 = vld [vmem:[%s3 + $0x28] sm:$0xff]
      %v529 = vld [vmem:[%s3 + $0x30] sm:$0xff]
      %v530 = vld [vmem:[%s3 + $0x38] sm:$0xff]
      %v531 = vld [vmem:[%s4] sm:$0x1]
      %v533 = vlaneseq
      %v534 = vshrl.u32 %v533, 7
      %v535 = vsub.s32 0, %v534
      %v536 = vrot.slane %v531, %v535
      %vm538 = vcmask 523264
      %v540 = vsel %vm538, %v522, 0
      %542 = vmatprep.subr.mxu0 0.0
      %543 = vmatpush1.msra.mxu0 0.0
      %544 = vmatprep.subr.mxu0 0.0
      %545 = vmatpush1.msra.mxu0 0.0
      %546 = vmatprep.subr.mxu0 0.0
      %547 = vmatpush1.msra.mxu0 0.0
      %548 = vmatprep.subr.mxu0 0.0
      %549 = vmatpush1.msra.mxu0 0.0
      %550 = vmatprep.subr.mxu0 0.0
      %551 = vmatpush1.msra.mxu0 0.0
      %552 = vmatprep.subr.mxu0 0.0
      %553 = vmatpush1.msra.mxu0 0.0
      %554 = vmatprep.subr.mxu0 0.0
      %555 = vmatpush1.msra.mxu0 0.0
      %556 = vmatprep.subr.mxu0 0.0
      %557 = vmatpush1.msra.mxu0 0.0
      %558 = vmatprep.subr.mxu0 0.0
      %559 = vmatpush1.msra.mxu0 %v530
      %560 = vmatprep.subr.mxu0 0.0
      %561 = vmatpush1.msra.mxu0 %v529
      %562 = vmatprep.subr.mxu0 0.0
      %563 = vmatpush1.msra.mxu0 %v528
      %564 = vmatprep.subr.mxu0 0.0
      %565 = vmatpush1.msra.mxu0 %v527
      %566 = vmatprep.subr.mxu0 0.0
      %567 = vmatpush1.msra.mxu0 %v526
      %568 = vmatprep.subr.mxu0 0.0
      %569 = vmatpush1.msra.mxu0 %v525
      %570 = vmatprep.subr.mxu0 0.0
      %571 = vmatpush1.msra.mxu0 %v524
      %572 = vmatprep.subr.mxu0 0.0
      %573 = vmatpush1.msra.mxu0 %v523
      %574 = vmatprep.subr.mxu0 0.0
      %575 = vmatpush2.msra.mxu0 0.0
      %576 = vmatprep.subr.mxu0 0.0
      %577 = vmatpush2.msra.mxu0 0.0
      %578 = vmatprep.subr.mxu0 0.0
      %579 = vmatpush2.msra.mxu0 0.0
      %580 = vmatprep.subr.mxu0 0.0
      %581 = vmatpush2.msra.mxu0 0.0
      %582 = vmatprep.subr.mxu0 0.0
      %583 = vmatpush2.msra.mxu0 0.0
      %584 = vmatprep.subr.mxu0 0.0
      %585 = vmatpush2.msra.mxu0 0.0
      %586 = vmatprep.subr.mxu0 0.0
      %587 = vmatpush2.msra.mxu0 0.0
      %588 = vmatprep.subr.mxu0 0.0
      %589 = vmatpush2.msra.mxu0 0.0
      %590 = vmatprep.subr.mxu0 0.0
      %591 = vmatpush2.msra.mxu0 0.0
      %592 = vmatprep.subr.mxu0 0.0
      %593 = vmatpush2.msra.mxu0 0.0
      %594 = vmatprep.subr.mxu0 0.0
      %595 = vmatpush2.msra.mxu0 0.0
      %596 = vmatprep.subr.mxu0 0.0
      %597 = vmatpush2.msra.mxu0 0.0
      %598 = vmatprep.subr.mxu0 0.0
      %599 = vmatpush2.msra.mxu0 0.0
      %600 = vmatprep.subr.mxu0 0.0
      %601 = vmatpush2.msra.mxu0 0.0
      %602 = vmatprep.subr.mxu0 0.0
      %603 = vmatpush2.msra.mxu0 0.0
      %604 = vmatprep.subr.mxu0 0.0
      %605 = vmatpush2.msra.mxu0 0.0
      %606 = vmatprep.mubr.f32.mxu0 0.0
      %607 = vmatmul.mubr.f32.gmra.mxu0 %v540
      %v608 = vpop.f32.mrf.mxu0
      %v609 = vadd.f32 %v536, %v608
      %v610 = vpop.f32.mrf.mxu0
      %611 = vdwg.mxu0
      %v612 = vmax.f32 %v609, 0.0
      %v613 = vld [vmem:[%s5] sm:$0xff]
      %v614 = vld [vmem:[%s5 + $0x8] sm:$0xff]
      %v615 = vld [vmem:[%s5 + $0x10] sm:$0xff]
      %v616 = vld [vmem:[%s5 + $0x18] sm:$0xff]
      %v617 = vld [vmem:[%s5 + $0x20] sm:$0xff]
      %v618 = vld [vmem:[%s5 + $0x28] sm:$0xff]
      %v619 = vld [vmem:[%s5 + $0x30] sm:$0xff]
      %v620 = vld [vmem:[%s5 + $0x38] sm:$0xff]
      %v621 = vld [vmem:[%s6] sm:$0x1]
      %v623 = vlaneseq
      %v624 = vshrl.u32 %v623, 7
      %v625 = vsub.s32 0, %v624
      %v626 = vrot.slane %v621, %v625
      %v629 = vsel %vm538, %v612, 0
      %631 = vmatprep.subr.mxu0 0.0
      %632 = vmatpush1.msra.mxu0 0.0
      %633 = vmatprep.subr.mxu0 0.0
      %634 = vmatpush1.msra.mxu0 0.0
      %635 = vmatprep.subr.mxu0 0.0
      %636 = vmatpush1.msra.mxu0 0.0
      %637 = vmatprep.subr.mxu0 0.0
      %638 = vmatpush1.msra.mxu0 0.0
      %639 = vmatprep.subr.mxu0 0.0
      %640 = vmatpush1.msra.mxu0 0.0
      %641 = vmatprep.subr.mxu0 0.0
      %642 = vmatpush1.msra.mxu0 0.0
      %643 = vmatprep.subr.mxu0 0.0
      %644 = vmatpush1.msra.mxu0 0.0
      %645 = vmatprep.subr.mxu0 0.0
      %646 = vmatpush1.msra.mxu0 0.0
      %647 = vmatprep.subr.mxu0 0.0
      %648 = vmatpush1.msra.mxu0 %v620
      %649 = vmatprep.subr.mxu0 0.0
      %650 = vmatpush1.msra.mxu0 %v619
      %651 = vmatprep.subr.mxu0 0.0
      %652 = vmatpush1.msra.mxu0 %v618
      %653 = vmatprep.subr.mxu0 0.0
      %654 = vmatpush1.msra.mxu0 %v617
      %655 = vmatprep.subr.mxu0 0.0
      %656 = vmatpush1.msra.mxu0 %v616
      %657 = vmatprep.subr.mxu0 0.0
      %658 = vmatpush1.msra.mxu0 %v615
      %659 = vmatprep.subr.mxu0 0.0
      %660 = vmatpush1.msra.mxu0 %v614
      %661 = vmatprep.subr.mxu0 0.0
      %662 = vmatpush1.msra.mxu0 %v613
      %663 = vmatprep.subr.mxu0 0.0
      %664 = vmatpush2.msra.mxu0 0.0
      %665 = vmatprep.subr.mxu0 0.0
      %666 = vmatpush2.msra.mxu0 0.0
      %667 = vmatprep.subr.mxu0 0.0
      %668 = vmatpush2.msra.mxu0 0.0
      %669 = vmatprep.subr.mxu0 0.0
      %670 = vmatpush2.msra.mxu0 0.0
      %671 = vmatprep.subr.mxu0 0.0
      %672 = vmatpush2.msra.mxu0 0.0
      %673 = vmatprep.subr.mxu0 0.0
      %674 = vmatpush2.msra.mxu0 0.0
      %675 = vmatprep.subr.mxu0 0.0
      %676 = vmatpush2.msra.mxu0 0.0
      %677 = vmatprep.subr.mxu0 0.0
      %678 = vmatpush2.msra.mxu0 0.0
      %679 = vmatprep.subr.mxu0 0.0
      %680 = vmatpush2.msra.mxu0 0.0
      %681 = vmatprep.subr.mxu0 0.0
      %682 = vmatpush2.msra.mxu0 0.0
      %683 = vmatprep.subr.mxu0 0.0
      %684 = vmatpush2.msra.mxu0 0.0
      %685 = vmatprep.subr.mxu0 0.0
      %686 = vmatpush2.msra.mxu0 0.0
      %687 = vmatprep.subr.mxu0 0.0
      %688 = vmatpush2.msra.mxu0 0.0
      %689 = vmatprep.subr.mxu0 0.0
      %690 = vmatpush2.msra.mxu0 0.0
      %691 = vmatprep.subr.mxu0 0.0
      %692 = vmatpush2.msra.mxu0 0.0
      %693 = vmatprep.subr.mxu0 0.0
      %694 = vmatpush2.msra.mxu0 0.0
      %695 = vmatprep.mubr.f32.mxu0 0.0
      %696 = vmatmul.mubr.f32.gmra.mxu0 %v629
      %v697 = vpop.f32.mrf.mxu0
      %v698 = vadd.f32 %v626, %v697
      %v699 = vpop.f32.mrf.mxu0
      %700 = vdwg.mxu0
      %v701 = vmax.f32 %v698, 0.0
      %v702 = vld [vmem:[%s7] sm:$0xff]
      %v703 = vld [vmem:[%s7 + $0x8] sm:$0xff]
      %v704 = vld [vmem:[%s7 + $0x10] sm:$0xff]
      %v705 = vld [vmem:[%s7 + $0x18] sm:$0xff]
      %v706 = vld [vmem:[%s7 + $0x20] sm:$0xff]
      %v707 = vld [vmem:[%s7 + $0x28] sm:$0xff]
      %v708 = vld [vmem:[%s7 + $0x30] sm:$0xff]
      %v709 = vld [vmem:[%s7 + $0x38] sm:$0xff]
      %v710 = vld [vmem:[%s7 + $0x40] sm:$0xff]
      %v711 = vld [vmem:[%s7 + $0x48] sm:$0xff]
      %v712 = vld [vmem:[%s7 + $0x50] sm:$0xff]
      %v713 = vld [vmem:[%s7 + $0x58] sm:$0xff]
      %v714 = vld [vmem:[%s7 + $0x60] sm:$0xff]
      %v715 = vld [vmem:[%s7 + $0x68] sm:$0xff]
      %v716 = vld [vmem:[%s7 + $0x70] sm:$0xff]
      %v717 = vld [vmem:[%s7 + $0x78] sm:$0xff]
      %v718 = vld [vmem:[%s7 + $0x80] sm:$0xff]
      %v719 = vld [vmem:[%s7 + $0x88] sm:$0xff]
      %v720 = vld [vmem:[%s7 + $0x90] sm:$0xff]
      %v721 = vld [vmem:[%s7 + $0x98] sm:$0xff]
      %v722 = vld [vmem:[%s7 + $0xa0] sm:$0xff]
      %v723 = vld [vmem:[%s7 + $0xa8] sm:$0xff]
      %v724 = vld [vmem:[%s7 + $0xb0] sm:$0xff]
      %v725 = vld [vmem:[%s7 + $0xb8] sm:$0xff]
      %v726 = vld [vmem:[%s7 + $0xc0] sm:$0xff]
      %v727 = vld [vmem:[%s7 + $0xc8] sm:$0xff]
      %v728 = vld [vmem:[%s7 + $0xd0] sm:$0xff]
      %v729 = vld [vmem:[%s7 + $0xd8] sm:$0xff]
      %v730 = vld [vmem:[%s7 + $0xe0] sm:$0xff]
      %v731 = vld [vmem:[%s7 + $0xe8] sm:$0xff]
      %v732 = vld [vmem:[%s7 + $0xf0] sm:$0xff]
      %v733 = vld [vmem:[%s7 + $0xf8] sm:$0xff]
      %v734 = vld [vmem:[%s8] sm:$0x3]
      %v736 = vlaneseq
      %v737 = vshrl.u32 %v736, 7
      %v738 = vsub.s32 0, %v737
      %v739 = vrot.slane %v734, %v738
      %v740 = vlaneseq
      %v741 = vshrl.u32 %v740, 7
      %v742 = vsub.s32 1, %v741
      %v743 = vrot.slane %v734, %v742
      %746 = vmatprep.subr.mxu0 %v733
      %747 = vmatpush1.msra.mxu0 %v732
      %748 = vmatprep.subr.mxu0 %v731
      %749 = vmatpush1.msra.mxu0 %v730
      %750 = vmatprep.subr.mxu0 %v729
      %751 = vmatpush1.msra.mxu0 %v728
      %752 = vmatprep.subr.mxu0 %v727
      %753 = vmatpush1.msra.mxu0 %v726
      %754 = vmatprep.subr.mxu0 %v725
      %755 = vmatpush1.msra.mxu0 %v724
      %756 = vmatprep.subr.mxu0 %v723
      %757 = vmatpush1.msra.mxu0 %v722
      %758 = vmatprep.subr.mxu0 %v721
      %759 = vmatpush1.msra.mxu0 %v720
      %760 = vmatprep.subr.mxu0 %v719
      %761 = vmatpush1.msra.mxu0 %v718
      %762 = vmatprep.subr.mxu0 %v717
      %763 = vmatpush1.msra.mxu0 %v716
      %764 = vmatprep.subr.mxu0 %v715
      %765 = vmatpush1.msra.mxu0 %v714
      %766 = vmatprep.subr.mxu0 %v713
      %767 = vmatpush1.msra.mxu0 %v712
      %768 = vmatprep.subr.mxu0 %v711
      %769 = vmatpush1.msra.mxu0 %v710
      %770 = vmatprep.subr.mxu0 %v709
      %771 = vmatpush1.msra.mxu0 %v708
      %772 = vmatprep.subr.mxu0 %v707
      %773 = vmatpush1.msra.mxu0 %v706
      %774 = vmatprep.subr.mxu0 %v705
      %775 = vmatpush1.msra.mxu0 %v704
      %776 = vmatprep.subr.mxu0 %v703
      %777 = vmatpush1.msra.mxu0 %v702
      %778 = vmatprep.subr.mxu0 0.0
      %779 = vmatpush2.msra.mxu0 0.0
      %780 = vmatprep.subr.mxu0 0.0
      %781 = vmatpush2.msra.mxu0 0.0
      %782 = vmatprep.subr.mxu0 0.0
      %783 = vmatpush2.msra.mxu0 0.0
      %784 = vmatprep.subr.mxu0 0.0
      %785 = vmatpush2.msra.mxu0 0.0
      %786 = vmatprep.subr.mxu0 0.0
      %787 = vmatpush2.msra.mxu0 0.0
      %788 = vmatprep.subr.mxu0 0.0
      %789 = vmatpush2.msra.mxu0 0.0
      %790 = vmatprep.subr.mxu0 0.0
      %791 = vmatpush2.msra.mxu0 0.0
      %792 = vmatprep.subr.mxu0 0.0
      %793 = vmatpush2.msra.mxu0 0.0
      %794 = vmatprep.subr.mxu0 0.0
      %795 = vmatpush2.msra.mxu0 0.0
      %796 = vmatprep.subr.mxu0 0.0
      %797 = vmatpush2.msra.mxu0 0.0
      %798 = vmatprep.subr.mxu0 0.0
      %799 = vmatpush2.msra.mxu0 0.0
      %800 = vmatprep.subr.mxu0 0.0
      %801 = vmatpush2.msra.mxu0 0.0
      %802 = vmatprep.subr.mxu0 0.0
      %803 = vmatpush2.msra.mxu0 0.0
      %804 = vmatprep.subr.mxu0 0.0
      %805 = vmatpush2.msra.mxu0 0.0
      %806 = vmatprep.subr.mxu0 0.0
      %807 = vmatpush2.msra.mxu0 0.0
      %808 = vmatprep.subr.mxu0 0.0
      %809 = vmatpush2.msra.mxu0 0.0
      %810 = vmatprep.mubr.f32.mxu0 0.0
      %811 = vmatmul.mubr.f32.gmra.mxu0 %v701
      %v812 = vpop.f32.mrf.mxu0
      %v813 = vadd.f32 %v739, %v812
      %v814 = vpop.f32.mrf.mxu0
      %v815 = vadd.f32 %v743, %v814
      %816 = vdwg.mxu0
      %v817 = vmax.f32 %v813, 0.0
      %v818 = vmax.f32 %v815, 0.0
      %v819 = vld [vmem:[%s9] sm:$0xff]
      %v820 = vld [vmem:[%s9 + $0x8] sm:$0xff]
      %v821 = vld [vmem:[%s9 + $0x10] sm:$0xff]
      %v822 = vld [vmem:[%s9 + $0x18] sm:$0xff]
      %v823 = vld [vmem:[%s9 + $0x20] sm:$0xff]
      %v824 = vld [vmem:[%s9 + $0x28] sm:$0xff]
      %v825 = vld [vmem:[%s9 + $0x30] sm:$0xff]
      %v826 = vld [vmem:[%s9 + $0x38] sm:$0xff]
      %v827 = vld [vmem:[%s9 + $0x40] sm:$0xff]
      %v828 = vld [vmem:[%s9 + $0x48] sm:$0xff]
      %v829 = vld [vmem:[%s9 + $0x50] sm:$0xff]
      %v830 = vld [vmem:[%s9 + $0x58] sm:$0xff]
      %v831 = vld [vmem:[%s9 + $0x60] sm:$0xff]
      %v832 = vld [vmem:[%s9 + $0x68] sm:$0xff]
      %v833 = vld [vmem:[%s9 + $0x70] sm:$0xff]
      %v834 = vld [vmem:[%s9 + $0x78] sm:$0xff]
      %v835 = vld [vmem:[%s9 + $0x80] sm:$0xff]
      %v836 = vld [vmem:[%s9 + $0x88] sm:$0xff]
      %v837 = vld [vmem:[%s9 + $0x90] sm:$0xff]
      %v838 = vld [vmem:[%s9 + $0x98] sm:$0xff]
      %v839 = vld [vmem:[%s9 + $0xa0] sm:$0xff]
      %v840 = vld [vmem:[%s9 + $0xa8] sm:$0xff]
      %v841 = vld [vmem:[%s9 + $0xb0] sm:$0xff]
      %v842 = vld [vmem:[%s9 + $0xb8] sm:$0xff]
      %v843 = vld [vmem:[%s9 + $0xc0] sm:$0xff]
      %v844 = vld [vmem:[%s9 + $0xc8] sm:$0xff]
      %v845 = vld [vmem:[%s9 + $0xd0] sm:$0xff]
      %v846 = vld [vmem:[%s9 + $0xd8] sm:$0xff]
      %v847 = vld [vmem:[%s9 + $0xe0] sm:$0xff]
      %v848 = vld [vmem:[%s9 + $0xe8] sm:$0xff]
      %v849 = vld [vmem:[%s9 + $0xf0] sm:$0xff]
      %v850 = vld [vmem:[%s9 + $0xf8] sm:$0xff]
      %v851 = vld [vmem:[%s10] sm:$0x1]
      %v853 = vlaneseq
      %v854 = vshrl.u32 %v853, 7
      %v855 = vsub.s32 0, %v854
      %v856 = vrot.slane %v851, %v855
      %858 = vmatprep.subr.mxu0 0.0
      %859 = vmatpush1.msra.mxu0 %v834
      %860 = vmatprep.subr.mxu0 0.0
      %861 = vmatpush1.msra.mxu0 %v833
      %862 = vmatprep.subr.mxu0 0.0
      %863 = vmatpush1.msra.mxu0 %v832
      %864 = vmatprep.subr.mxu0 0.0
      %865 = vmatpush1.msra.mxu0 %v831
      %866 = vmatprep.subr.mxu0 0.0
      %867 = vmatpush1.msra.mxu0 %v830
      %868 = vmatprep.subr.mxu0 0.0
      %869 = vmatpush1.msra.mxu0 %v829
      %870 = vmatprep.subr.mxu0 0.0
      %871 = vmatpush1.msra.mxu0 %v828
      %872 = vmatprep.subr.mxu0 0.0
      %873 = vmatpush1.msra.mxu0 %v827
      %874 = vmatprep.subr.mxu0 0.0
      %875 = vmatpush1.msra.mxu0 %v826
      %876 = vmatprep.subr.mxu0 0.0
      %877 = vmatpush1.msra.mxu0 %v825
      %878 = vmatprep.subr.mxu0 0.0
      %879 = vmatpush1.msra.mxu0 %v824
      %880 = vmatprep.subr.mxu0 0.0
      %881 = vmatpush1.msra.mxu0 %v823
      %882 = vmatprep.subr.mxu0 0.0
      %883 = vmatpush1.msra.mxu0 %v822
      %884 = vmatprep.subr.mxu0 0.0
      %885 = vmatpush1.msra.mxu0 %v821
      %886 = vmatprep.subr.mxu0 0.0
      %887 = vmatpush1.msra.mxu0 %v820
      %888 = vmatprep.subr.mxu0 0.0
      %889 = vmatpush1.msra.mxu0 %v819
      %890 = vmatprep.subr.mxu0 0.0
      %891 = vmatpush2.msra.mxu0 %v850
      %892 = vmatprep.subr.mxu0 0.0
      %893 = vmatpush2.msra.mxu0 %v849
      %894 = vmatprep.subr.mxu0 0.0
      %895 = vmatpush2.msra.mxu0 %v848
      %896 = vmatprep.subr.mxu0 0.0
      %897 = vmatpush2.msra.mxu0 %v847
      %898 = vmatprep.subr.mxu0 0.0
      %899 = vmatpush2.msra.mxu0 %v846
      %900 = vmatprep.subr.mxu0 0.0
      %901 = vmatpush2.msra.mxu0 %v845
      %902 = vmatprep.subr.mxu0 0.0
      %903 = vmatpush2.msra.mxu0 %v844
      %904 = vmatprep.subr.mxu0 0.0
      %905 = vmatpush2.msra.mxu0 %v843
      %906 = vmatprep.subr.mxu0 0.0
      %907 = vmatpush2.msra.mxu0 %v842
      %908 = vmatprep.subr.mxu0 0.0
      %909 = vmatpush2.msra.mxu0 %v841
      %910 = vmatprep.subr.mxu0 0.0
      %911 = vmatpush2.msra.mxu0 %v840
      %912 = vmatprep.subr.mxu0 0.0
      %913 = vmatpush2.msra.mxu0 %v839
      %914 = vmatprep.subr.mxu0 0.0
      %915 = vmatpush2.msra.mxu0 %v838
      %916 = vmatprep.subr.mxu0 0.0
      %917 = vmatpush2.msra.mxu0 %v837
      %918 = vmatprep.subr.mxu0 0.0
      %919 = vmatpush2.msra.mxu0 %v836
      %920 = vmatprep.subr.mxu0 0.0
      %921 = vmatpush2.msra.mxu0 %v835
      %922 = vmatprep.mubr.f32.mxu0 %v818
      %923 = vmatmul.mubr.f32.gmra.mxu0 %v817
      %v924 = vpop.f32.mrf.mxu0
      %v925 = vadd.f32 %v856, %v924
      %v926 = vpop.f32.mrf.mxu0
      %927 = vdwg.mxu0
      %v928 = vmax.f32 %v925, 0.0
      %v929 = vld [vmem:[%s11] sm:$0xff]
      %v930 = vld [vmem:[%s11 + $0x8] sm:$0xff]
      %v931 = vld [vmem:[%s11 + $0x10] sm:$0xff]
      %v932 = vld [vmem:[%s11 + $0x18] sm:$0xff]
      %v933 = vld [vmem:[%s12] sm:$0x1]
      %v935 = vlaneseq
      %v936 = vshrl.u32 %v935, 7
      %v937 = vsub.s32 0, %v936
      %v938 = vrot.slane %v933, %v937
      %v941 = vsel %vm448, %v928, 0
      %943 = vmatprep.subr.mxu0 0.0
      %944 = vmatpush1.msra.mxu0 0.0
      %945 = vmatprep.subr.mxu0 0.0
      %946 = vmatpush1.msra.mxu0 0.0
      %947 = vmatprep.subr.mxu0 0.0
      %948 = vmatpush1.msra.mxu0 0.0
      %949 = vmatprep.subr.mxu0 0.0
      %950 = vmatpush1.msra.mxu0 0.0
      %951 = vmatprep.subr.mxu0 0.0
      %952 = vmatpush1.msra.mxu0 0.0
      %953 = vmatprep.subr.mxu0 0.0
      %954 = vmatpush1.msra.mxu0 0.0
      %955 = vmatprep.subr.mxu0 0.0
      %956 = vmatpush1.msra.mxu0 0.0
      %957 = vmatprep.subr.mxu0 0.0
      %958 = vmatpush1.msra.mxu0 0.0
      %959 = vmatprep.subr.mxu0 0.0
      %960 = vmatpush1.msra.mxu0 0.0
      %961 = vmatprep.subr.mxu0 0.0
      %962 = vmatpush1.msra.mxu0 0.0
      %963 = vmatprep.subr.mxu0 0.0
      %964 = vmatpush1.msra.mxu0 0.0
      %965 = vmatprep.subr.mxu0 0.0
      %966 = vmatpush1.msra.mxu0 0.0
      %967 = vmatprep.subr.mxu0 0.0
      %968 = vmatpush1.msra.mxu0 %v932
      %969 = vmatprep.subr.mxu0 0.0
      %970 = vmatpush1.msra.mxu0 %v931
      %971 = vmatprep.subr.mxu0 0.0
      %972 = vmatpush1.msra.mxu0 %v930
      %973 = vmatprep.subr.mxu0 0.0
      %974 = vmatpush1.msra.mxu0 %v929
      %975 = vmatprep.subr.mxu0 0.0
      %976 = vmatpush2.msra.mxu0 0.0
      %977 = vmatprep.subr.mxu0 0.0
      %978 = vmatpush2.msra.mxu0 0.0
      %979 = vmatprep.subr.mxu0 0.0
      %980 = vmatpush2.msra.mxu0 0.0
      %981 = vmatprep.subr.mxu0 0.0
      %982 = vmatpush2.msra.mxu0 0.0
      %983 = vmatprep.subr.mxu0 0.0
      %984 = vmatpush2.msra.mxu0 0.0
      %985 = vmatprep.subr.mxu0 0.0
      %986 = vmatpush2.msra.mxu0 0.0
      %987 = vmatprep.subr.mxu0 0.0
      %988 = vmatpush2.msra.mxu0 0.0
      %989 = vmatprep.subr.mxu0 0.0
      %990 = vmatpush2.msra.mxu0 0.0
      %991 = vmatprep.subr.mxu0 0.0
      %992 = vmatpush2.msra.mxu0 0.0
      %993 = vmatprep.subr.mxu0 0.0
      %994 = vmatpush2.msra.mxu0 0.0
      %995 = vmatprep.subr.mxu0 0.0
      %996 = vmatpush2.msra.mxu0 0.0
      %997 = vmatprep.subr.mxu0 0.0
      %998 = vmatpush2.msra.mxu0 0.0
      %999 = vmatprep.subr.mxu0 0.0
      %1000 = vmatpush2.msra.mxu0 0.0
      %1001 = vmatprep.subr.mxu0 0.0
      %1002 = vmatpush2.msra.mxu0 0.0
      %1003 = vmatprep.subr.mxu0 0.0
      %1004 = vmatpush2.msra.mxu0 0.0
      %1005 = vmatprep.subr.mxu0 0.0
      %1006 = vmatpush2.msra.mxu0 0.0
      %1007 = vmatprep.mubr.f32.mxu0 0.0
      %1008 = vmatmul.mubr.f32.gmra.mxu0 %v941
      %v1009 = vpop.f32.mrf.mxu0
      %v1010 = vadd.f32 %v938, %v1009
      %v1011 = vpop.f32.mrf.mxu0
      %1012 = vdwg.mxu0
      %v1013 = vxor.u32 %v1010, 2147483648
      %v1014 = vmul.f32 %v1013, 1.442695
      %v1015 = vpow.pop %v1014
      %v1016 = vadd.f32 %v1015, 1.0
      %v1017 = vrcp.pop %v1016
      %v1018 = vmul.f32 1.0, %v1017
      %vm1019 = vcmask 48128
      %1020 = vst.msk [vmem:[%s435] sm:$0xff] %vm1019, %v1018
      %p1021 = scmp.lt.s32.totalorder %s24, 3
      %s1022 = scalar_select %p1021, %s24, 3
      %s1023 = smul.addr %s1022, 8
      %s1024 = scalar_lea.vmem %s13, %s1023
      // Predicated region
      $region73: #{mymodel_forward.3} parent=71 // pred_check
        %p1025 = pneg %p320
      $region74: #{mymodel_forward.3} parent=71 // pred_check_branch
        %1027 = sbr.rel (%p1025) target = $region76
      $region75: #{mymodel_forward.3} parent=71 // pred_region
        _
      $region76: #{mymodel_forward.3} parent=71 // pred_fallthru
        _
    $region72: #{mymodel_forward.3} parent=5 // pred_fallthru
      _
    %p1028 = scmp.le.s32.totalorder 2, %s19
    // Predicated region
    $region77: #{mymodel_forward.3} parent=5 // pred_check
      %p1029 = pneg %p1028
    $region78: #{mymodel_forward.3} parent=5 // pred_check_branch
      %1031 = sbr.rel (%p1029) target = $region80
    $region79: #{mymodel_forward.3} parent=5 // pred_region
      %s1032 = ssub.s32 %s19, 2
      // Predicated region
      $region81: #{mymodel_forward.3} parent=79 // pred_check
        %p1033 = pneg %p326
      $region82: #{mymodel_forward.3} parent=79 // pred_check_branch
        %1035 = sbr.rel (%p1033) target = $region84
      $region83: #{mymodel_forward.3} parent=79 // pred_region
        %p1036 = scmp.lt.s32.totalorder %s25, 3
        %s1037 = scalar_select %p1036, %s25, 3
        %s1038 = smul.addr %s1037, 8
        %s1039 = scalar_lea.vmem %s13, %s1038
      $region84: #{mymodel_forward.3} parent=79 // pred_fallthru
        _
    $region80: #{mymodel_forward.3} parent=5 // pred_fallthru
      _
  $region6: #{mymodel_forward.3} parent=0 // loop_footer
    %s23 = sadd.s32 1, %s19
  $region7: #{mymodel_forward.3} parent=0 // loop_footer_branch
    %18 = sbr.rel target = $region3
  $region8: #{mymodel_forward.3} parent=0 // loop_exit
    _

</llo_original>
